<compile_context>
chip_gen: v7x
topology: tpu7x:2x2x1
jax: 0.10.0
libtpu: 0.0.40
codegen_flags: <defaults>
</compile_context>

<pallas_src>
import functools

import numpy as np
import jax
import jax.numpy as jnp
from jax import lax
from jax.experimental import pallas as pl
from jax.experimental.pallas import tpu as pltpu


# ----------------------------------------------------------------------------
# glue: bilinear sampling weights (parameter / index setup, no hot path)
# ----------------------------------------------------------------------------
def box_sample_coords(boxes, steps):
    # tensor_linspace(x0, x1, steps): inclusive endpoints
    t = jnp.arange(steps, dtype=jnp.float32) / (steps - 1)
    x0, y0, x1, y1 = boxes[:, 0], boxes[:, 1], boxes[:, 2], boxes[:, 3]
    X = x0[:, None] + (x1 - x0)[:, None] * t[None, :]
    Y = y0[:, None] + (y1 - y0)[:, None] * t[None, :]
    return X, Y


def bilinear_weight_matrix(coords, in_size):
    """coords: (O, S) box coords in [0,1].  Returns (O, S, in_size) weights
    reproducing grid_sample(bilinear, padding_mode='zeros', align_corners=True)."""
    p = coords * (in_size - 1)
    i0 = jnp.floor(p)
    i1 = i0 + 1.0
    w1 = p - i0
    w0 = 1.0 - w1
    grid = jnp.arange(in_size, dtype=jnp.float32)[None, None, :]
    i0e, i1e = i0[..., None], i1[..., None]
    m0 = ((grid == i0e) & (i0e >= 0) & (i0e < in_size)).astype(jnp.float32)
    m1 = ((grid == i1e) & (i1e >= 0) & (i1e < in_size)).astype(jnp.float32)
    return w0[..., None] * m0 + w1[..., None] * m1


# ----------------------------------------------------------------------------
# glue: conv -> dense matrix (channel-major flattening), GAP matrix  (host-side)
# ----------------------------------------------------------------------------
def conv_to_matrix(W, b, Cin, Hin, Win, stride, pad):
    """Dense matrix form of Conv2d: y_flat = x_flat @ M + bias (channel-major flat)."""
    OC, _, K, _ = W.shape
    Ho = (Hin + 2 * pad - K) // stride + 1
    Wo = (Win + 2 * pad - K) // stride + 1
    M = np.zeros((Cin * Hin * Win, OC * Ho * Wo), np.float32)
    bias = np.zeros((OC * Ho * Wo,), np.float32)
    for oc in range(OC):
        for i in range(Ho):
            for j in range(Wo):
                out_idx = oc * Ho * Wo + i * Wo + j
                bias[out_idx] = b[oc]
                for ci in range(Cin):
                    for ki in range(K):
                        for kj in range(K):
                            hi = i * stride + ki - pad
                            wi = j * stride + kj - pad
                            if 0 <= hi < Hin and 0 <= wi < Win:
                                M[ci * Hin * Win + hi * Win + wi, out_idx] += W[oc, ci, ki, kj]
    return M, bias


# ----------------------------------------------------------------------------
# fused Pallas kernel: crop (per-object matmul) -> conv1 -> ReLU -> folded tail
# ----------------------------------------------------------------------------
def _fused_kernel(feats_ref, wyx_ref, m1q_ref, b1_ref, mf_ref, bf_ref,
                  wc_ref, bc_ref, y_ref, real_ref, loss_ref, crop_scr):
    O = feats_ref.shape[0]      # objects
    C = feats_ref.shape[1]      # input channels
    F1 = m1q_ref.shape[2]       # conv1 flat output features (=128 here, lane-dense)

    # ---- crop: one (C, H*W) @ (H*W, S*S) MXU matmul per object (static unroll) ----
    # Result is written channel-major into a (C, O, S*S) VMEM scratch so that the
    # conv1 contraction below runs with M = O (objects batched into MXU rows).
    for o in range(O):
        crop_o = jnp.dot(feats_ref[o], wyx_ref[o],
                         preferred_element_type=jnp.float32)        # (C, S*S)
        for c in range(C):
            crop_scr[c, o:o + 1, :] = crop_o[c:c + 1, :]

    # ---- Conv2d(3->8, k3, s2, p1) as dense matmul over the flattened crop ----
    acc = jnp.zeros((O, F1), jnp.float32)
    for c in range(C):
        acc = acc + jnp.dot(crop_scr[c], m1q_ref[c],
                            preferred_element_type=jnp.float32)     # (O, F1)
    h = jnp.maximum(acc + b1_ref[...], 0.0)                          # ReLU (f32 VPU)

    # ---- Conv2 + GlobalAvgPool + Linear(16, 1024) folded into one matmul ----
    vecs = jnp.dot(h, mf_ref[...], preferred_element_type=jnp.float32) + bf_ref[...]

    # ---- merged heads: [real_classifier | obj_classifier] in one matmul ----
    scores = jnp.dot(vecs, wc_ref[...], preferred_element_type=jnp.float32) + bc_ref[...]
    real_ref[...] = scores[:, 0:1]                                   # (O, 1)

    # ---- cross entropy (mean) over object logits, f32 ----
    logits = scores[:, 1:]                                           # (O, num_obj)
    m = jnp.max(logits, axis=-1, keepdims=True)
    lse = m + jnp.log(jnp.sum(jnp.exp(logits - m), axis=-1, keepdims=True))
    picked = jnp.sum(logits * y_ref[...], axis=-1, keepdims=True)
    per_obj = lse - picked                                           # (O, 1)
    loss_ref[...] = jnp.sum(per_obj, axis=0, keepdims=True) * (1.0 / O)


@functools.partial(jax.jit, static_argnames=("object_size",))
def ac_crop_discriminator_forward(imgs, objs, boxes, obj_to_img, params, object_size):
    B, C, H, W = imgs.shape
    O = boxes.shape[0]
    S = object_size
    assert O > 0, "AcCropDiscriminator: need at least one object"

    # wrapper-side setup: gather per-object images, build per-object sampling matrix
    X, Y = box_sample_coords(boxes, S)
    Wy = bilinear_weight_matrix(Y, H)                                # (O, S, H)
    Wx = bilinear_weight_matrix(X, W)                                # (O, S, W)
    # Wyx[o, h*W+w, i*S+j] = Wy[o,i,h] * Wx[o,j,w]
    Wyx = jnp.einsum('oih,ojw->ohwij', Wy, Wx).reshape(O, H * W, S * S)
    feats = imgs[obj_to_img].astype(jnp.float32).reshape(O, C, H * W)

    num_obj = params["Wcomb"].shape[1] - 1
    F1 = params["M1q"].shape[2]
    Dfc = params["Mfused"].shape[1]
    y1h = jax.nn.one_hot(objs, num_obj, dtype=jnp.float32)

    flops = 2 * O * (C * H * W * S * S + C * S * S * F1 + F1 * Dfc + Dfc * (num_obj + 1))
    bytes_accessed = 4 * (feats.size + Wyx.size + params["M1q"].size + params["b1f"].size
                          + params["Mfused"].size + params["bfused"].size
                          + params["Wcomb"].size + params["bcomb"].size + y1h.size
                          + O + 1)

    real, loss = pl.pallas_call(
        _fused_kernel,
        out_shape=(jax.ShapeDtypeStruct((O, 1), jnp.float32),
                   jax.ShapeDtypeStruct((1, 1), jnp.float32)),
        scratch_shapes=[pltpu.VMEM((C, O, S * S), jnp.float32)],
        cost_estimate=pl.CostEstimate(flops=int(flops),
                                      transcendentals=int(O * (num_obj + 2)),
                                      bytes_accessed=int(bytes_accessed)),
    )(feats, Wyx, params["M1q"], params["b1f"], params["Mfused"], params["bfused"],
      params["Wcomb"], params["bcomb"], y1h)
    return real, loss[0, 0]


# ----------------------------------------------------------------------------
# deterministic parameter init + offline weight folding
# ----------------------------------------------------------------------------
def init_params(key, num_objects, in_C=3, S=8):
    k = jax.random.split(key, 10)
    C1, C2, K, stride, pad, D_fc = 8, 16, 3, 2, 1, 1024
    W1 = jax.random.normal(k[0], (C1, in_C, K, K), jnp.float32) * 0.1
    b1 = jax.random.normal(k[1], (C1,), jnp.float32) * 0.1
    W2 = jax.random.normal(k[2], (C2, C1, K, K), jnp.float32) * 0.1
    b2 = jax.random.normal(k[3], (C2,), jnp.float32) * 0.1
    Wfc = jax.random.normal(k[4], (D_fc, C2), jnp.float32) * 0.1
    bfc = jax.random.normal(k[5], (D_fc,), jnp.float32) * 0.1
    Wr = jax.random.normal(k[6], (1, D_fc), jnp.float32) * 0.05
    br = jax.random.normal(k[7], (1,), jnp.float32) * 0.05
    Wobj = jax.random.normal(k[8], (num_objects, D_fc), jnp.float32) * 0.05
    bobj = jax.random.normal(k[9], (num_objects,), jnp.float32) * 0.05

    H1 = (S + 2 * pad - K) // stride + 1          # 4
    H2 = (H1 + 2 * pad - K) // stride + 1         # 2
    F1 = C1 * H1 * H1                             # 128

    M1, b1f = conv_to_matrix(np.asarray(W1), np.asarray(b1), in_C, S, S, stride, pad)
    M2, b2f = conv_to_matrix(np.asarray(W2), np.asarray(b2), C1, H1, H1, stride, pad)
    P2 = H2 * H2
    G = np.zeros((C2 * P2, C2), np.float32)
    for c in range(C2):
        G[c * P2:(c + 1) * P2, c] = 1.0 / P2

    # fold the linear chain conv2 -> GAP -> Linear(16, 1024)
    WfcT = np.asarray(Wfc).T                                   # (16, 1024)
    Mfused = M2 @ G @ WfcT                                     # (128, 1024)
    bfused = (b2f @ G @ WfcT) + np.asarray(bfc)                # (1024,)

    # merge the two heads: col 0 = real score, cols 1.. = object logits
    Wcomb = np.concatenate([np.asarray(Wr).T, np.asarray(Wobj).T], axis=1)   # (1024, 1+num_obj)
    bcomb = np.concatenate([np.asarray(br), np.asarray(bobj)])               # (1+num_obj,)

    return dict(
        # raw params (for the pure-JAX reference)
        W1=W1, b1=b1, W2=W2, b2=b2, Wfc=Wfc, bfc=bfc, Wr=Wr, br=br,
        Wobj=Wobj, bobj=bobj,
        # folded kernel params
        M1q=jnp.asarray(M1.reshape(in_C, S * S, F1)),
        b1f=jnp.asarray(b1f)[None, :],
        Mfused=jnp.asarray(Mfused),
        bfused=jnp.asarray(bfused)[None, :],
        Wcomb=jnp.asarray(Wcomb),
        bcomb=jnp.asarray(bcomb)[None, :],
    )


# ----------------------------------------------------------------------------
# pure-JAX reference (lax.conv + separable bilinear, unfused weights)
# ----------------------------------------------------------------------------
def reference_forward(imgs, objs, boxes, obj_to_img, params, S):
    B, C, H, W = imgs.shape
    X, Y = box_sample_coords(boxes, S)
    Wy = bilinear_weight_matrix(Y, H)
    Wx = bilinear_weight_matrix(X, W)
    feats = imgs[obj_to_img]
    crops = jnp.einsum('oph,ochw,oqw->ocpq', Wy, feats, Wx)
    a1 = lax.conv_general_dilated(crops, params["W1"], (2, 2), [(1, 1), (1, 1)],
                                  dimension_numbers=("NCHW", "OIHW", "NCHW"))
    a1 = jnp.maximum(a1 + params["b1"][None, :, None, None], 0.0)
    a2 = lax.conv_general_dilated(a1, params["W2"], (2, 2), [(1, 1), (1, 1)],
                                  dimension_numbers=("NCHW", "OIHW", "NCHW"))
    a2 = a2 + params["b2"][None, :, None, None]
    gap = a2.reshape(a2.shape[0], a2.shape[1], -1).mean(-1)
    vecs = gap @ params["Wfc"].T + params["bfc"]
    real = vecs @ params["Wr"].T + params["br"]
    logits = vecs @ params["Wobj"].T + params["bobj"]
    lse = jax.nn.logsumexp(logits, axis=-1)
    picked = jnp.take_along_axis(logits, objs[:, None], axis=-1)[:, 0]
    return real, jnp.mean(lse - picked)


if __name__ == "__main__":
    key = jax.random.PRNGKey(0)
    kp, ki, kb0, kbs, ko = jax.random.split(key, 5)

    num_objects = 16
    vocab = {"object_idx_to_name": ["obj%d" % i for i in range(num_objects)]}
    object_size = 8

    B, C, H, W = 2, 3, 16, 16
    O = 8
    imgs = jax.random.normal(ki, (B, C, H, W), jnp.float32)
    obj_to_img = jnp.array([0, 0, 0, 0, 1, 1, 1, 1], jnp.int32)   # sorted by image
    objs = jax.random.randint(ko, (O,), 0, num_objects, dtype=jnp.int32)
    xy0 = jax.random.uniform(kb0, (O, 2), minval=0.0, maxval=0.5)
    wh = jax.random.uniform(kbs, (O, 2), minval=0.2, maxval=0.5)
    boxes = jnp.concatenate([xy0, xy0 + wh], axis=1)              # [x0, y0, x1, y1] in [0,1]

    params = init_params(kp, num_objects, in_C=C, S=object_size)

    real_scores, ac_loss = ac_crop_discriminator_forward(
        imgs, objs, boxes, obj_to_img, params, object_size)
    jax.block_until_ready((real_scores, ac_loss))

    real_ref, loss_ref = reference_forward(imgs, objs, boxes, obj_to_img, params, object_size)
    assert np.allclose(np.asarray(real_scores), np.asarray(real_ref), atol=5e-3, rtol=5e-3)
    assert np.allclose(float(ac_loss), float(loss_ref), atol=5e-3, rtol=5e-3)
    print("KERNEL_OK")
</pallas_src>

<mosaic_0001>
module attributes {stable_mosaic.version = 11 : i64} {
  func.func @_fused_kernel(%arg0: memref<8x3x256xf32, #tpu.memory_space<vmem>>, %arg1: memref<8x256x64xf32, #tpu.memory_space<vmem>>, %arg2: memref<3x64x128xf32, #tpu.memory_space<vmem>>, %arg3: memref<1x128xf32, #tpu.memory_space<vmem>>, %arg4: memref<128x1024xf32, #tpu.memory_space<vmem>>, %arg5: memref<1x1024xf32, #tpu.memory_space<vmem>>, %arg6: memref<1024x17xf32, #tpu.memory_space<vmem>>, %arg7: memref<1x17xf32, #tpu.memory_space<vmem>>, %arg8: memref<8x16xf32, #tpu.memory_space<vmem>>, %arg9: memref<8x1xf32, #tpu.memory_space<vmem>>, %arg10: memref<1x1xf32, #tpu.memory_space<vmem>>, %arg11: memref<3x8x64xf32, #tpu.memory_space<vmem>>) attributes {dimension_semantics = [], scalar_prefetch = 0 : i64, scratch_operands = 1 : i64, tpu.core_type = #tpu.core_type<tc>} {
    %c0 = arith.constant 0 : index
    %c0_0 = arith.constant 0 : index
    %c0_1 = arith.constant 0 : index
    %0 = vector.load %arg0[%c0, %c0_0, %c0_1] : memref<8x3x256xf32, #tpu.memory_space<vmem>>, vector<1x3x256xf32>
    %1 = vector.shape_cast %0 : vector<1x3x256xf32> to vector<3x256xf32>
    %c0_2 = arith.constant 0 : index
    %c0_3 = arith.constant 0 : index
    %c0_4 = arith.constant 0 : index
    %2 = vector.load %arg1[%c0_2, %c0_3, %c0_4] : memref<8x256x64xf32, #tpu.memory_space<vmem>>, vector<1x256x64xf32>
    %3 = vector.shape_cast %2 : vector<1x256x64xf32> to vector<256x64xf32>
    %cst = arith.constant dense<0.000000e+00> : vector<3x64xf32>
    %4 = tpu.matmul %1, %3, %cst {dimension_numbers = #tpu.dot_dimension_numbers<[1], [0], [0], [1], [0, 0, 1, 1], [], []>} : vector<3x256xf32>, vector<256x64xf32>, vector<3x64xf32> -> vector<3x64xf32>
    %5 = vector.extract_strided_slice %4 {offsets = [0, 0], sizes = [1, 64], strides = [1, 1]} : vector<3x64xf32> to vector<1x64xf32>
    %c0_5 = arith.constant 0 : index
    %c0_6 = arith.constant 0 : index
    %c0_7 = arith.constant 0 : index
    %6 = vector.load %arg11[%c0_5, %c0_6, %c0_7] : memref<3x8x64xf32, #tpu.memory_space<vmem>>, vector<1x1x64xf32>
    %7 = vector.shape_cast %6 : vector<1x1x64xf32> to vector<1x64xf32>
    %8 = vector.shape_cast %5 : vector<1x64xf32> to vector<1x1x64xf32>
    tpu.vector_store %arg11[%c0_5, %c0_6, %c0_7], %8 {strides = array<i32>} : memref<3x8x64xf32, #tpu.memory_space<vmem>>, vector<1x1x64xf32>,
    %9 = vector.extract_strided_slice %4 {offsets = [1, 0], sizes = [1, 64], strides = [1, 1]} : vector<3x64xf32> to vector<1x64xf32>
    %c1 = arith.constant 1 : index
    %c0_8 = arith.constant 0 : index
    %c0_9 = arith.constant 0 : index
    %10 = vector.load %arg11[%c1, %c0_8, %c0_9] : memref<3x8x64xf32, #tpu.memory_space<vmem>>, vector<1x1x64xf32>
    %11 = vector.shape_cast %10 : vector<1x1x64xf32> to vector<1x64xf32>
    %12 = vector.shape_cast %9 : vector<1x64xf32> to vector<1x1x64xf32>
    tpu.vector_store %arg11[%c1, %c0_8, %c0_9], %12 {strides = array<i32>} : memref<3x8x64xf32, #tpu.memory_space<vmem>>, vector<1x1x64xf32>,
    %13 = vector.extract_strided_slice %4 {offsets = [2, 0], sizes = [1, 64], strides = [1, 1]} : vector<3x64xf32> to vector<1x64xf32>
    %c2 = arith.constant 2 : index
    %c0_10 = arith.constant 0 : index
    %c0_11 = arith.constant 0 : index
    %14 = vector.load %arg11[%c2, %c0_10, %c0_11] : memref<3x8x64xf32, #tpu.memory_space<vmem>>, vector<1x1x64xf32>
    %15 = vector.shape_cast %14 : vector<1x1x64xf32> to vector<1x64xf32>
    %16 = vector.shape_cast %13 : vector<1x64xf32> to vector<1x1x64xf32>
    tpu.vector_store %arg11[%c2, %c0_10, %c0_11], %16 {strides = array<i32>} : memref<3x8x64xf32, #tpu.memory_space<vmem>>, vector<1x1x64xf32>,
    %c1_12 = arith.constant 1 : index
    %c0_13 = arith.constant 0 : index
    %c0_14 = arith.constant 0 : index
    %17 = vector.load %arg0[%c1_12, %c0_13, %c0_14] : memref<8x3x256xf32, #tpu.memory_space<vmem>>, vector<1x3x256xf32>
    %18 = vector.shape_cast %17 : vector<1x3x256xf32> to vector<3x256xf32>
    %c1_15 = arith.constant 1 : index
    %c0_16 = arith.constant 0 : index
    %c0_17 = arith.constant 0 : index
    %19 = vector.load %arg1[%c1_15, %c0_16, %c0_17] : memref<8x256x64xf32, #tpu.memory_space<vmem>>, vector<1x256x64xf32>
    %20 = vector.shape_cast %19 : vector<1x256x64xf32> to vector<256x64xf32>
    %cst_18 = arith.constant dense<0.000000e+00> : vector<3x64xf32>
    %21 = tpu.matmul %18, %20, %cst_18 {dimension_numbers = #tpu.dot_dimension_numbers<[1], [0], [0], [1], [0, 0, 1, 1], [], []>} : vector<3x256xf32>, vector<256x64xf32>, vector<3x64xf32> -> vector<3x64xf32>
    %22 = vector.extract_strided_slice %21 {offsets = [0, 0], sizes = [1, 64], strides = [1, 1]} : vector<3x64xf32> to vector<1x64xf32>
    %c0_19 = arith.constant 0 : index
    %c1_20 = arith.constant 1 : index
    %c0_21 = arith.constant 0 : index
    %23 = vector.load %arg11[%c0_19, %c1_20, %c0_21] : memref<3x8x64xf32, #tpu.memory_space<vmem>>, vector<1x1x64xf32>
    %24 = vector.shape_cast %23 : vector<1x1x64xf32> to vector<1x64xf32>
    %25 = vector.shape_cast %22 : vector<1x64xf32> to vector<1x1x64xf32>
    tpu.vector_store %arg11[%c0_19, %c1_20, %c0_21], %25 {strides = array<i32>} : memref<3x8x64xf32, #tpu.memory_space<vmem>>, vector<1x1x64xf32>,
    %26 = vector.extract_strided_slice %21 {offsets = [1, 0], sizes = [1, 64], strides = [1, 1]} : vector<3x64xf32> to vector<1x64xf32>
    %c1_22 = arith.constant 1 : index
    %c1_23 = arith.constant 1 : index
    %c0_24 = arith.constant 0 : index
    %27 = vector.load %arg11[%c1_22, %c1_23, %c0_24] : memref<3x8x64xf32, #tpu.memory_space<vmem>>, vector<1x1x64xf32>
    %28 = vector.shape_cast %27 : vector<1x1x64xf32> to vector<1x64xf32>
    %29 = vector.shape_cast %26 : vector<1x64xf32> to vector<1x1x64xf32>
    tpu.vector_store %arg11[%c1_22, %c1_23, %c0_24], %29 {strides = array<i32>} : memref<3x8x64xf32, #tpu.memory_space<vmem>>, vector<1x1x64xf32>,
    %30 = vector.extract_strided_slice %21 {offsets = [2, 0], sizes = [1, 64], strides = [1, 1]} : vector<3x64xf32> to vector<1x64xf32>
    %c2_25 = arith.constant 2 : index
    %c1_26 = arith.constant 1 : index
    %c0_27 = arith.constant 0 : index
    %31 = vector.load %arg11[%c2_25, %c1_26, %c0_27] : memref<3x8x64xf32, #tpu.memory_space<vmem>>, vector<1x1x64xf32>
    %32 = vector.shape_cast %31 : vector<1x1x64xf32> to vector<1x64xf32>
    %33 = vector.shape_cast %30 : vector<1x64xf32> to vector<1x1x64xf32>
    tpu.vector_store %arg11[%c2_25, %c1_26, %c0_27], %33 {strides = array<i32>} : memref<3x8x64xf32, #tpu.memory_space<vmem>>, vector<1x1x64xf32>,
    %c2_28 = arith.constant 2 : index
    %c0_29 = arith.constant 0 : index
    %c0_30 = arith.constant 0 : index
    %34 = vector.load %arg0[%c2_28, %c0_29, %c0_30] : memref<8x3x256xf32, #tpu.memory_space<vmem>>, vector<1x3x256xf32>
    %35 = vector.shape_cast %34 : vector<1x3x256xf32> to vector<3x256xf32>
    %c2_31 = arith.constant 2 : index
    %c0_32 = arith.constant 0 : index
    %c0_33 = arith.constant 0 : index
    %36 = vector.load %arg1[%c2_31, %c0_32, %c0_33] : memref<8x256x64xf32, #tpu.memory_space<vmem>>, vector<1x256x64xf32>
    %37 = vector.shape_cast %36 : vector<1x256x64xf32> to vector<256x64xf32>
    %cst_34 = arith.constant dense<0.000000e+00> : vector<3x64xf32>
    %38 = tpu.matmul %35, %37, %cst_34 {dimension_numbers = #tpu.dot_dimension_numbers<[1], [0], [0], [1], [0, 0, 1, 1], [], []>} : vector<3x256xf32>, vector<256x64xf32>, vector<3x64xf32> -> vector<3x64xf32>
    %39 = vector.extract_strided_slice %38 {offsets = [0, 0], sizes = [1, 64], strides = [1, 1]} : vector<3x64xf32> to vector<1x64xf32>
    %c0_35 = arith.constant 0 : index
    %c2_36 = arith.constant 2 : index
    %c0_37 = arith.constant 0 : index
    %40 = vector.load %arg11[%c0_35, %c2_36, %c0_37] : memref<3x8x64xf32, #tpu.memory_space<vmem>>, vector<1x1x64xf32>
    %41 = vector.shape_cast %40 : vector<1x1x64xf32> to vector<1x64xf32>
    %42 = vector.shape_cast %39 : vector<1x64xf32> to vector<1x1x64xf32>
    tpu.vector_store %arg11[%c0_35, %c2_36, %c0_37], %42 {strides = array<i32>} : memref<3x8x64xf32, #tpu.memory_space<vmem>>, vector<1x1x64xf32>,
    %43 = vector.extract_strided_slice %38 {offsets = [1, 0], sizes = [1, 64], strides = [1, 1]} : vector<3x64xf32> to vector<1x64xf32>
    %c1_38 = arith.constant 1 : index
    %c2_39 = arith.constant 2 : index
    %c0_40 = arith.constant 0 : index
    %44 = vector.load %arg11[%c1_38, %c2_39, %c0_40] : memref<3x8x64xf32, #tpu.memory_space<vmem>>, vector<1x1x64xf32>
    %45 = vector.shape_cast %44 : vector<1x1x64xf32> to vector<1x64xf32>
    %46 = vector.shape_cast %43 : vector<1x64xf32> to vector<1x1x64xf32>
    tpu.vector_store %arg11[%c1_38, %c2_39, %c0_40], %46 {strides = array<i32>} : memref<3x8x64xf32, #tpu.memory_space<vmem>>, vector<1x1x64xf32>,
    %47 = vector.extract_strided_slice %38 {offsets = [2, 0], sizes = [1, 64], strides = [1, 1]} : vector<3x64xf32> to vector<1x64xf32>
    %c2_41 = arith.constant 2 : index
    %c2_42 = arith.constant 2 : index
    %c0_43 = arith.constant 0 : index
    %48 = vector.load %arg11[%c2_41, %c2_42, %c0_43] : memref<3x8x64xf32, #tpu.memory_space<vmem>>, vector<1x1x64xf32>
    %49 = vector.shape_cast %48 : vector<1x1x64xf32> to vector<1x64xf32>
    %50 = vector.shape_cast %47 : vector<1x64xf32> to vector<1x1x64xf32>
    tpu.vector_store %arg11[%c2_41, %c2_42, %c0_43], %50 {strides = array<i32>} : memref<3x8x64xf32, #tpu.memory_space<vmem>>, vector<1x1x64xf32>,
    %c3 = arith.constant 3 : index
    %c0_44 = arith.constant 0 : index
    %c0_45 = arith.constant 0 : index
    %51 = vector.load %arg0[%c3, %c0_44, %c0_45] : memref<8x3x256xf32, #tpu.memory_space<vmem>>, vector<1x3x256xf32>
    %52 = vector.shape_cast %51 : vector<1x3x256xf32> to vector<3x256xf32>
    %c3_46 = arith.constant 3 : index
    %c0_47 = arith.constant 0 : index
    %c0_48 = arith.constant 0 : index
    %53 = vector.load %arg1[%c3_46, %c0_47, %c0_48] : memref<8x256x64xf32, #tpu.memory_space<vmem>>, vector<1x256x64xf32>
    %54 = vector.shape_cast %53 : vector<1x256x64xf32> to vector<256x64xf32>
    %cst_49 = arith.constant dense<0.000000e+00> : vector<3x64xf32>
    %55 = tpu.matmul %52, %54, %cst_49 {dimension_numbers = #tpu.dot_dimension_numbers<[1], [0], [0], [1], [0, 0, 1, 1], [], []>} : vector<3x256xf32>, vector<256x64xf32>, vector<3x64xf32> -> vector<3x64xf32>
    %56 = vector.extract_strided_slice %55 {offsets = [0, 0], sizes = [1, 64], strides = [1, 1]} : vector<3x64xf32> to vector<1x64xf32>
    %c0_50 = arith.constant 0 : index
    %c3_51 = arith.constant 3 : index
    %c0_52 = arith.constant 0 : index
    %57 = vector.load %arg11[%c0_50, %c3_51, %c0_52] : memref<3x8x64xf32, #tpu.memory_space<vmem>>, vector<1x1x64xf32>
    %58 = vector.shape_cast %57 : vector<1x1x64xf32> to vector<1x64xf32>
    %59 = vector.shape_cast %56 : vector<1x64xf32> to vector<1x1x64xf32>
    tpu.vector_store %arg11[%c0_50, %c3_51, %c0_52], %59 {strides = array<i32>} : memref<3x8x64xf32, #tpu.memory_space<vmem>>, vector<1x1x64xf32>,
    %60 = vector.extract_strided_slice %55 {offsets = [1, 0], sizes = [1, 64], strides = [1, 1]} : vector<3x64xf32> to vector<1x64xf32>
    %c1_53 = arith.constant 1 : index
    %c3_54 = arith.constant 3 : index
    %c0_55 = arith.constant 0 : index
    %61 = vector.load %arg11[%c1_53, %c3_54, %c0_55] : memref<3x8x64xf32, #tpu.memory_space<vmem>>, vector<1x1x64xf32>
    %62 = vector.shape_cast %61 : vector<1x1x64xf32> to vector<1x64xf32>
    %63 = vector.shape_cast %60 : vector<1x64xf32> to vector<1x1x64xf32>
    tpu.vector_store %arg11[%c1_53, %c3_54, %c0_55], %63 {strides = array<i32>} : memref<3x8x64xf32, #tpu.memory_space<vmem>>, vector<1x1x64xf32>,
    %64 = vector.extract_strided_slice %55 {offsets = [2, 0], sizes = [1, 64], strides = [1, 1]} : vector<3x64xf32> to vector<1x64xf32>
    %c2_56 = arith.constant 2 : index
    %c3_57 = arith.constant 3 : index
    %c0_58 = arith.constant 0 : index
    %65 = vector.load %arg11[%c2_56, %c3_57, %c0_58] : memref<3x8x64xf32, #tpu.memory_space<vmem>>, vector<1x1x64xf32>
    %66 = vector.shape_cast %65 : vector<1x1x64xf32> to vector<1x64xf32>
    %67 = vector.shape_cast %64 : vector<1x64xf32> to vector<1x1x64xf32>
    tpu.vector_store %arg11[%c2_56, %c3_57, %c0_58], %67 {strides = array<i32>} : memref<3x8x64xf32, #tpu.memory_space<vmem>>, vector<1x1x64xf32>,
    %c4 = arith.constant 4 : index
    %c0_59 = arith.constant 0 : index
    %c0_60 = arith.constant 0 : index
    %68 = vector.load %arg0[%c4, %c0_59, %c0_60] : memref<8x3x256xf32, #tpu.memory_space<vmem>>, vector<1x3x256xf32>
    %69 = vector.shape_cast %68 : vector<1x3x256xf32> to vector<3x256xf32>
    %c4_61 = arith.constant 4 : index
    %c0_62 = arith.constant 0 : index
    %c0_63 = arith.constant 0 : index
    %70 = vector.load %arg1[%c4_61, %c0_62, %c0_63] : memref<8x256x64xf32, #tpu.memory_space<vmem>>, vector<1x256x64xf32>
    %71 = vector.shape_cast %70 : vector<1x256x64xf32> to vector<256x64xf32>
    %cst_64 = arith.constant dense<0.000000e+00> : vector<3x64xf32>
    %72 = tpu.matmul %69, %71, %cst_64 {dimension_numbers = #tpu.dot_dimension_numbers<[1], [0], [0], [1], [0, 0, 1, 1], [], []>} : vector<3x256xf32>, vector<256x64xf32>, vector<3x64xf32> -> vector<3x64xf32>
    %73 = vector.extract_strided_slice %72 {offsets = [0, 0], sizes = [1, 64], strides = [1, 1]} : vector<3x64xf32> to vector<1x64xf32>
    %c0_65 = arith.constant 0 : index
    %c4_66 = arith.constant 4 : index
    %c0_67 = arith.constant 0 : index
    %74 = vector.load %arg11[%c0_65, %c4_66, %c0_67] : memref<3x8x64xf32, #tpu.memory_space<vmem>>, vector<1x1x64xf32>
    %75 = vector.shape_cast %74 : vector<1x1x64xf32> to vector<1x64xf32>
    %76 = vector.shape_cast %73 : vector<1x64xf32> to vector<1x1x64xf32>
    tpu.vector_store %arg11[%c0_65, %c4_66, %c0_67], %76 {strides = array<i32>} : memref<3x8x64xf32, #tpu.memory_space<vmem>>, vector<1x1x64xf32>,
    %77 = vector.extract_strided_slice %72 {offsets = [1, 0], sizes = [1, 64], strides = [1, 1]} : vector<3x64xf32> to vector<1x64xf32>
    %c1_68 = arith.constant 1 : index
    %c4_69 = arith.constant 4 : index
    %c0_70 = arith.constant 0 : index
    %78 = vector.load %arg11[%c1_68, %c4_69, %c0_70] : memref<3x8x64xf32, #tpu.memory_space<vmem>>, vector<1x1x64xf32>
    %79 = vector.shape_cast %78 : vector<1x1x64xf32> to vector<1x64xf32>
    %80 = vector.shape_cast %77 : vector<1x64xf32> to vector<1x1x64xf32>
    tpu.vector_store %arg11[%c1_68, %c4_69, %c0_70], %80 {strides = array<i32>} : memref<3x8x64xf32, #tpu.memory_space<vmem>>, vector<1x1x64xf32>,
    %81 = vector.extract_strided_slice %72 {offsets = [2, 0], sizes = [1, 64], strides = [1, 1]} : vector<3x64xf32> to vector<1x64xf32>
    %c2_71 = arith.constant 2 : index
    %c4_72 = arith.constant 4 : index
    %c0_73 = arith.constant 0 : index
    %82 = vector.load %arg11[%c2_71, %c4_72, %c0_73] : memref<3x8x64xf32, #tpu.memory_space<vmem>>, vector<1x1x64xf32>
    %83 = vector.shape_cast %82 : vector<1x1x64xf32> to vector<1x64xf32>
    %84 = vector.shape_cast %81 : vector<1x64xf32> to vector<1x1x64xf32>
    tpu.vector_store %arg11[%c2_71, %c4_72, %c0_73], %84 {strides = array<i32>} : memref<3x8x64xf32, #tpu.memory_space<vmem>>, vector<1x1x64xf32>,
    %c5 = arith.constant 5 : index
    %c0_74 = arith.constant 0 : index
    %c0_75 = arith.constant 0 : index
    %85 = vector.load %arg0[%c5, %c0_74, %c0_75] : memref<8x3x256xf32, #tpu.memory_space<vmem>>, vector<1x3x256xf32>
    %86 = vector.shape_cast %85 : vector<1x3x256xf32> to vector<3x256xf32>
    %c5_76 = arith.constant 5 : index
    %c0_77 = arith.constant 0 : index
    %c0_78 = arith.constant 0 : index
    %87 = vector.load %arg1[%c5_76, %c0_77, %c0_78] : memref<8x256x64xf32, #tpu.memory_space<vmem>>, vector<1x256x64xf32>
    %88 = vector.shape_cast %87 : vector<1x256x64xf32> to vector<256x64xf32>
    %cst_79 = arith.constant dense<0.000000e+00> : vector<3x64xf32>
    %89 = tpu.matmul %86, %88, %cst_79 {dimension_numbers = #tpu.dot_dimension_numbers<[1], [0], [0], [1], [0, 0, 1, 1], [], []>} : vector<3x256xf32>, vector<256x64xf32>, vector<3x64xf32> -> vector<3x64xf32>
    %90 = vector.extract_strided_slice %89 {offsets = [0, 0], sizes = [1, 64], strides = [1, 1]} : vector<3x64xf32> to vector<1x64xf32>
    %c0_80 = arith.constant 0 : index
    %c5_81 = arith.constant 5 : index
    %c0_82 = arith.constant 0 : index
    %91 = vector.load %arg11[%c0_80, %c5_81, %c0_82] : memref<3x8x64xf32, #tpu.memory_space<vmem>>, vector<1x1x64xf32>
    %92 = vector.shape_cast %91 : vector<1x1x64xf32> to vector<1x64xf32>
    %93 = vector.shape_cast %90 : vector<1x64xf32> to vector<1x1x64xf32>
    tpu.vector_store %arg11[%c0_80, %c5_81, %c0_82], %93 {strides = array<i32>} : memref<3x8x64xf32, #tpu.memory_space<vmem>>, vector<1x1x64xf32>,
    %94 = vector.extract_strided_slice %89 {offsets = [1, 0], sizes = [1, 64], strides = [1, 1]} : vector<3x64xf32> to vector<1x64xf32>
    %c1_83 = arith.constant 1 : index
    %c5_84 = arith.constant 5 : index
    %c0_85 = arith.constant 0 : index
    %95 = vector.load %arg11[%c1_83, %c5_84, %c0_85] : memref<3x8x64xf32, #tpu.memory_space<vmem>>, vector<1x1x64xf32>
    %96 = vector.shape_cast %95 : vector<1x1x64xf32> to vector<1x64xf32>
    %97 = vector.shape_cast %94 : vector<1x64xf32> to vector<1x1x64xf32>
    tpu.vector_store %arg11[%c1_83, %c5_84, %c0_85], %97 {strides = array<i32>} : memref<3x8x64xf32, #tpu.memory_space<vmem>>, vector<1x1x64xf32>,
    %98 = vector.extract_strided_slice %89 {offsets = [2, 0], sizes = [1, 64], strides = [1, 1]} : vector<3x64xf32> to vector<1x64xf32>
    %c2_86 = arith.constant 2 : index
    %c5_87 = arith.constant 5 : index
    %c0_88 = arith.constant 0 : index
    %99 = vector.load %arg11[%c2_86, %c5_87, %c0_88] : memref<3x8x64xf32, #tpu.memory_space<vmem>>, vector<1x1x64xf32>
    %100 = vector.shape_cast %99 : vector<1x1x64xf32> to vector<1x64xf32>
    %101 = vector.shape_cast %98 : vector<1x64xf32> to vector<1x1x64xf32>
    tpu.vector_store %arg11[%c2_86, %c5_87, %c0_88], %101 {strides = array<i32>} : memref<3x8x64xf32, #tpu.memory_space<vmem>>, vector<1x1x64xf32>,
    %c6 = arith.constant 6 : index
    %c0_89 = arith.constant 0 : index
    %c0_90 = arith.constant 0 : index
    %102 = vector.load %arg0[%c6, %c0_89, %c0_90] : memref<8x3x256xf32, #tpu.memory_space<vmem>>, vector<1x3x256xf32>
    %103 = vector.shape_cast %102 : vector<1x3x256xf32> to vector<3x256xf32>
    %c6_91 = arith.constant 6 : index
    %c0_92 = arith.constant 0 : index
    %c0_93 = arith.constant 0 : index
    %104 = vector.load %arg1[%c6_91, %c0_92, %c0_93] : memref<8x256x64xf32, #tpu.memory_space<vmem>>, vector<1x256x64xf32>
    %105 = vector.shape_cast %104 : vector<1x256x64xf32> to vector<256x64xf32>
    %cst_94 = arith.constant dense<0.000000e+00> : vector<3x64xf32>
    %106 = tpu.matmul %103, %105, %cst_94 {dimension_numbers = #tpu.dot_dimension_numbers<[1], [0], [0], [1], [0, 0, 1, 1], [], []>} : vector<3x256xf32>, vector<256x64xf32>, vector<3x64xf32> -> vector<3x64xf32>
    %107 = vector.extract_strided_slice %106 {offsets = [0, 0], sizes = [1, 64], strides = [1, 1]} : vector<3x64xf32> to vector<1x64xf32>
    %c0_95 = arith.constant 0 : index
    %c6_96 = arith.constant 6 : index
    %c0_97 = arith.constant 0 : index
    %108 = vector.load %arg11[%c0_95, %c6_96, %c0_97] : memref<3x8x64xf32, #tpu.memory_space<vmem>>, vector<1x1x64xf32>
    %109 = vector.shape_cast %108 : vector<1x1x64xf32> to vector<1x64xf32>
    %110 = vector.shape_cast %107 : vector<1x64xf32> to vector<1x1x64xf32>
    tpu.vector_store %arg11[%c0_95, %c6_96, %c0_97], %110 {strides = array<i32>} : memref<3x8x64xf32, #tpu.memory_space<vmem>>, vector<1x1x64xf32>,
    %111 = vector.extract_strided_slice %106 {offsets = [1, 0], sizes = [1, 64], strides = [1, 1]} : vector<3x64xf32> to vector<1x64xf32>
    %c1_98 = arith.constant 1 : index
    %c6_99 = arith.constant 6 : index
    %c0_100 = arith.constant 0 : index
    %112 = vector.load %arg11[%c1_98, %c6_99, %c0_100] : memref<3x8x64xf32, #tpu.memory_space<vmem>>, vector<1x1x64xf32>
    %113 = vector.shape_cast %112 : vector<1x1x64xf32> to vector<1x64xf32>
    %114 = vector.shape_cast %111 : vector<1x64xf32> to vector<1x1x64xf32>
    tpu.vector_store %arg11[%c1_98, %c6_99, %c0_100], %114 {strides = array<i32>} : memref<3x8x64xf32, #tpu.memory_space<vmem>>, vector<1x1x64xf32>,
    %115 = vector.extract_strided_slice %106 {offsets = [2, 0], sizes = [1, 64], strides = [1, 1]} : vector<3x64xf32> to vector<1x64xf32>
    %c2_101 = arith.constant 2 : index
    %c6_102 = arith.constant 6 : index
    %c0_103 = arith.constant 0 : index
    %116 = vector.load %arg11[%c2_101, %c6_102, %c0_103] : memref<3x8x64xf32, #tpu.memory_space<vmem>>, vector<1x1x64xf32>
    %117 = vector.shape_cast %116 : vector<1x1x64xf32> to vector<1x64xf32>
    %118 = vector.shape_cast %115 : vector<1x64xf32> to vector<1x1x64xf32>
    tpu.vector_store %arg11[%c2_101, %c6_102, %c0_103], %118 {strides = array<i32>} : memref<3x8x64xf32, #tpu.memory_space<vmem>>, vector<1x1x64xf32>,
    %c7 = arith.constant 7 : index
    %c0_104 = arith.constant 0 : index
    %c0_105 = arith.constant 0 : index
    %119 = vector.load %arg0[%c7, %c0_104, %c0_105] : memref<8x3x256xf32, #tpu.memory_space<vmem>>, vector<1x3x256xf32>
    %120 = vector.shape_cast %119 : vector<1x3x256xf32> to vector<3x256xf32>
    %c7_106 = arith.constant 7 : index
    %c0_107 = arith.constant 0 : index
    %c0_108 = arith.constant 0 : index
    %121 = vector.load %arg1[%c7_106, %c0_107, %c0_108] : memref<8x256x64xf32, #tpu.memory_space<vmem>>, vector<1x256x64xf32>
    %122 = vector.shape_cast %121 : vector<1x256x64xf32> to vector<256x64xf32>
    %cst_109 = arith.constant dense<0.000000e+00> : vector<3x64xf32>
    %123 = tpu.matmul %120, %122, %cst_109 {dimension_numbers = #tpu.dot_dimension_numbers<[1], [0], [0], [1], [0, 0, 1, 1], [], []>} : vector<3x256xf32>, vector<256x64xf32>, vector<3x64xf32> -> vector<3x64xf32>
    %124 = vector.extract_strided_slice %123 {offsets = [0, 0], sizes = [1, 64], strides = [1, 1]} : vector<3x64xf32> to vector<1x64xf32>
    %c0_110 = arith.constant 0 : index
    %c7_111 = arith.constant 7 : index
    %c0_112 = arith.constant 0 : index
    %125 = vector.load %arg11[%c0_110, %c7_111, %c0_112] : memref<3x8x64xf32, #tpu.memory_space<vmem>>, vector<1x1x64xf32>
    %126 = vector.shape_cast %125 : vector<1x1x64xf32> to vector<1x64xf32>
    %127 = vector.shape_cast %124 : vector<1x64xf32> to vector<1x1x64xf32>
    tpu.vector_store %arg11[%c0_110, %c7_111, %c0_112], %127 {strides = array<i32>} : memref<3x8x64xf32, #tpu.memory_space<vmem>>, vector<1x1x64xf32>,
    %128 = vector.extract_strided_slice %123 {offsets = [1, 0], sizes = [1, 64], strides = [1, 1]} : vector<3x64xf32> to vector<1x64xf32>
    %c1_113 = arith.constant 1 : index
    %c7_114 = arith.constant 7 : index
    %c0_115 = arith.constant 0 : index
    %129 = vector.load %arg11[%c1_113, %c7_114, %c0_115] : memref<3x8x64xf32, #tpu.memory_space<vmem>>, vector<1x1x64xf32>
    %130 = vector.shape_cast %129 : vector<1x1x64xf32> to vector<1x64xf32>
    %131 = vector.shape_cast %128 : vector<1x64xf32> to vector<1x1x64xf32>
    tpu.vector_store %arg11[%c1_113, %c7_114, %c0_115], %131 {strides = array<i32>} : memref<3x8x64xf32, #tpu.memory_space<vmem>>, vector<1x1x64xf32>,
    %132 = vector.extract_strided_slice %123 {offsets = [2, 0], sizes = [1, 64], strides = [1, 1]} : vector<3x64xf32> to vector<1x64xf32>
    %c2_116 = arith.constant 2 : index
    %c7_117 = arith.constant 7 : index
    %c0_118 = arith.constant 0 : index
    %133 = vector.load %arg11[%c2_116, %c7_117, %c0_118] : memref<3x8x64xf32, #tpu.memory_space<vmem>>, vector<1x1x64xf32>
    %134 = vector.shape_cast %133 : vector<1x1x64xf32> to vector<1x64xf32>
    %135 = vector.shape_cast %132 : vector<1x64xf32> to vector<1x1x64xf32>
    tpu.vector_store %arg11[%c2_116, %c7_117, %c0_118], %135 {strides = array<i32>} : memref<3x8x64xf32, #tpu.memory_space<vmem>>, vector<1x1x64xf32>,
    %cst_119 = arith.constant 0.000000e+00 : f32
    %136 = vector.broadcast %cst_119 : f32 to vector<8x128xf32>
    %c0_120 = arith.constant 0 : index
    %c0_121 = arith.constant 0 : index
    %c0_122 = arith.constant 0 : index
    %137 = vector.load %arg11[%c0_120, %c0_121, %c0_122] : memref<3x8x64xf32, #tpu.memory_space<vmem>>, vector<1x8x64xf32>
    %138 = vector.shape_cast %137 : vector<1x8x64xf32> to vector<8x64xf32>
    %c0_123 = arith.constant 0 : index
    %c0_124 = arith.constant 0 : index
    %c0_125 = arith.constant 0 : index
    %139 = vector.load %arg2[%c0_123, %c0_124, %c0_125] : memref<3x64x128xf32, #tpu.memory_space<vmem>>, vector<1x64x128xf32>
    %140 = vector.shape_cast %139 : vector<1x64x128xf32> to vector<64x128xf32>
    %cst_126 = arith.constant dense<0.000000e+00> : vector<8x128xf32>
    %141 = tpu.matmul %138, %140, %cst_126 {dimension_numbers = #tpu.dot_dimension_numbers<[1], [0], [0], [1], [0, 0, 1, 1], [], []>} : vector<8x64xf32>, vector<64x128xf32>, vector<8x128xf32> -> vector<8x128xf32>
    %142 = arith.addf %136, %141 : vector<8x128xf32>
    %c1_127 = arith.constant 1 : index
    %c0_128 = arith.constant 0 : index
    %c0_129 = arith.constant 0 : index
    %143 = vector.load %arg11[%c1_127, %c0_128, %c0_129] : memref<3x8x64xf32, #tpu.memory_space<vmem>>, vector<1x8x64xf32>
    %144 = vector.shape_cast %143 : vector<1x8x64xf32> to vector<8x64xf32>
    %c1_130 = arith.constant 1 : index
    %c0_131 = arith.constant 0 : index
    %c0_132 = arith.constant 0 : index
    %145 = vector.load %arg2[%c1_130, %c0_131, %c0_132] : memref<3x64x128xf32, #tpu.memory_space<vmem>>, vector<1x64x128xf32>
    %146 = vector.shape_cast %145 : vector<1x64x128xf32> to vector<64x128xf32>
    %cst_133 = arith.constant dense<0.000000e+00> : vector<8x128xf32>
    %147 = tpu.matmul %144, %146, %cst_133 {dimension_numbers = #tpu.dot_dimension_numbers<[1], [0], [0], [1], [0, 0, 1, 1], [], []>} : vector<8x64xf32>, vector<64x128xf32>, vector<8x128xf32> -> vector<8x128xf32>
    %148 = arith.addf %142, %147 : vector<8x128xf32>
    %c2_134 = arith.constant 2 : index
    %c0_135 = arith.constant 0 : index
    %c0_136 = arith.constant 0 : index
    %149 = vector.load %arg11[%c2_134, %c0_135, %c0_136] : memref<3x8x64xf32, #tpu.memory_space<vmem>>, vector<1x8x64xf32>
    %150 = vector.shape_cast %149 : vector<1x8x64xf32> to vector<8x64xf32>
    %c2_137 = arith.constant 2 : index
    %c0_138 = arith.constant 0 : index
    %c0_139 = arith.constant 0 : index
    %151 = vector.load %arg2[%c2_137, %c0_138, %c0_139] : memref<3x64x128xf32, #tpu.memory_space<vmem>>, vector<1x64x128xf32>
    %152 = vector.shape_cast %151 : vector<1x64x128xf32> to vector<64x128xf32>
    %cst_140 = arith.constant dense<0.000000e+00> : vector<8x128xf32>
    %153 = tpu.matmul %150, %152, %cst_140 {dimension_numbers = #tpu.dot_dimension_numbers<[1], [0], [0], [1], [0, 0, 1, 1], [], []>} : vector<8x64xf32>, vector<64x128xf32>, vector<8x128xf32> -> vector<8x128xf32>
    %154 = arith.addf %148, %153 : vector<8x128xf32>
    %c0_141 = arith.constant 0 : index
    %c0_142 = arith.constant 0 : index
    %155 = vector.load %arg3[%c0_141, %c0_142] : memref<1x128xf32, #tpu.memory_space<vmem>>, vector<1x128xf32>
    %156 = vector.broadcast %155 : vector<1x128xf32> to vector<8x128xf32>
    %157 = arith.addf %154, %156 : vector<8x128xf32>
    %cst_143 = arith.constant 0.000000e+00 : f32
    %158 = vector.broadcast %cst_143 : f32 to vector<8x128xf32>
    %159 = arith.maximumf %157, %158 : vector<8x128xf32>
    %c0_144 = arith.constant 0 : index
    %c0_145 = arith.constant 0 : index
    %160 = vector.load %arg4[%c0_144, %c0_145] : memref<128x1024xf32, #tpu.memory_space<vmem>>, vector<128x1024xf32>
    %cst_146 = arith.constant dense<0.000000e+00> : vector<8x1024xf32>
    %161 = tpu.matmul %159, %160, %cst_146 {dimension_numbers = #tpu.dot_dimension_numbers<[1], [0], [0], [1], [0, 0, 1, 1], [], []>} : vector<8x128xf32>, vector<128x1024xf32>, vector<8x1024xf32> -> vector<8x1024xf32>
    %c0_147 = arith.constant 0 : index
    %c0_148 = arith.constant 0 : index
    %162 = vector.load %arg5[%c0_147, %c0_148] : memref<1x1024xf32, #tpu.memory_space<vmem>>, vector<1x1024xf32>
    %163 = vector.broadcast %162 : vector<1x1024xf32> to vector<8x1024xf32>
    %164 = arith.addf %161, %163 : vector<8x1024xf32>
    %c0_149 = arith.constant 0 : index
    %c0_150 = arith.constant 0 : index
    %165 = vector.load %arg6[%c0_149, %c0_150] : memref<1024x17xf32, #tpu.memory_space<vmem>>, vector<1024x17xf32>
    %cst_151 = arith.constant dense<0.000000e+00> : vector<8x17xf32>
    %166 = tpu.matmul %164, %165, %cst_151 {dimension_numbers = #tpu.dot_dimension_numbers<[1], [0], [0], [1], [0, 0, 1, 1], [], []>} : vector<8x1024xf32>, vector<1024x17xf32>, vector<8x17xf32> -> vector<8x17xf32>
    %c0_152 = arith.constant 0 : index
    %c0_153 = arith.constant 0 : index
    %167 = vector.load %arg7[%c0_152, %c0_153] : memref<1x17xf32, #tpu.memory_space<vmem>>, vector<1x17xf32>
    %168 = vector.broadcast %167 : vector<1x17xf32> to vector<8x17xf32>
    %169 = arith.addf %166, %168 : vector<8x17xf32>
    %170 = vector.extract_strided_slice %169 {offsets = [0, 0], sizes = [8, 1], strides = [1, 1]} : vector<8x17xf32> to vector<8x1xf32>
    %c0_154 = arith.constant 0 : index
    %c0_155 = arith.constant 0 : index
    %171 = vector.load %arg9[%c0_154, %c0_155] : memref<8x1xf32, #tpu.memory_space<vmem>>, vector<8x1xf32>
    tpu.vector_store %arg9[%c0_154, %c0_155], %170 {strides = array<i32>} : memref<8x1xf32, #tpu.memory_space<vmem>>, vector<8x1xf32>,
    %172 = vector.extract_strided_slice %169 {offsets = [0, 1], sizes = [8, 16], strides = [1, 1]} : vector<8x17xf32> to vector<8x16xf32>
    %cst_156 = arith.constant dense<0xFF800000> : vector<8xf32>
    %173 = vector.multi_reduction <maximumf>, %172, %cst_156 [1] : vector<8x16xf32> to vector<8xf32>
    %174 = vector.shape_cast %173 : vector<8xf32> to vector<8x1xf32>
    %175 = vector.broadcast %174 : vector<8x1xf32> to vector<8x16xf32>
    %176 = arith.subf %172, %175 : vector<8x16xf32>
    %177 = math.exp %176 : vector<8x16xf32>
    %cst_157 = arith.constant dense<0.000000e+00> : vector<8xf32>
    %178 = vector.multi_reduction <add>, %177, %cst_157 [1] : vector<8x16xf32> to vector<8xf32>
    %179 = vector.shape_cast %178 : vector<8xf32> to vector<8x1xf32>
    %180 = math.log %179 : vector<8x1xf32>
    %181 = arith.addf %174, %180 : vector<8x1xf32>
    %c0_158 = arith.constant 0 : index
    %c0_159 = arith.constant 0 : index
    %182 = vector.load %arg8[%c0_158, %c0_159] : memref<8x16xf32, #tpu.memory_space<vmem>>, vector<8x16xf32>
    %183 = arith.mulf %172, %182 : vector<8x16xf32>
    %cst_160 = arith.constant dense<0.000000e+00> : vector<8xf32>
    %184 = vector.multi_reduction <add>, %183, %cst_160 [1] : vector<8x16xf32> to vector<8xf32>
    %185 = vector.shape_cast %184 : vector<8xf32> to vector<8x1xf32>
    %186 = arith.subf %181, %185 : vector<8x1xf32>
    %cst_161 = arith.constant dense<0.000000e+00> : vector<1xf32>
    %187 = vector.multi_reduction <add>, %186, %cst_161 [0] : vector<8x1xf32> to vector<1xf32>
    %188 = vector.shape_cast %187 : vector<1xf32> to vector<1x1xf32>
    %cst_162 = arith.constant 1.250000e-01 : f32
    %189 = vector.broadcast %cst_162 : f32 to vector<1x1xf32>
    %190 = arith.mulf %188, %189 : vector<1x1xf32>
    %c0_163 = arith.constant 0 : index
    %c0_164 = arith.constant 0 : index
    %191 = vector.load %arg10[%c0_163, %c0_164] : memref<1x1xf32, #tpu.memory_space<vmem>>, vector<1x1xf32>
    tpu.vector_store %arg10[%c0_163, %c0_164], %190 {strides = array<i32>} : memref<1x1xf32, #tpu.memory_space<vmem>>, vector<1x1xf32>,
    return
  }
}

</mosaic_0001>

<llo_original>
// kernel: ac_crop_discriminator_forward.1
$region0: #{ac_crop_discriminator_forward.1}
  #allocation0 [shape = 'u32[]', space=smem, size = 0x4, offset = 0x4, fixed_abs, tag = 'smem constant byte address 0x4 - core index']
  #allocation1 [shape = 'u32[144,128]{1,0:T(1,128)}', space=vmem, size = 0x12000, scoped, tag = 'internal scratch']
  #allocation2 [shape = 'f32[3,8,64]{2,1,0:T(8,128)}', space=vmem, size = 0x3000, scoped, tag = 'scratch operand']
  %s0 = inlined_call_operand.vmem [shape: f32[8,3,256], index: 0, kind: input, shape index: {}]
  %s1 = inlined_call_operand.vmem [shape: f32[8,256,64], index: 1, kind: input, shape index: {}]
  %s2 = inlined_call_operand.vmem [shape: f32[3,64,128], index: 2, kind: input, shape index: {}]
  %s3 = inlined_call_operand.vmem [shape: f32[1,128], index: 3, kind: input, shape index: {}]
  %s4 = inlined_call_operand.vmem [shape: f32[128,1024], index: 4, kind: input, shape index: {}]
  %s5 = inlined_call_operand.vmem [shape: f32[1,1024], index: 5, kind: input, shape index: {}]
  %s6 = inlined_call_operand.vmem [shape: f32[1024,17], index: 6, kind: input, shape index: {}]
  %s7 = inlined_call_operand.vmem [shape: f32[1,17], index: 7, kind: input, shape index: {}]
  %s8 = inlined_call_operand.vmem [shape: f32[8,16], index: 8, kind: input, shape index: {}]
  %s9 = inlined_call_operand.vmem [shape: f32[8,1], index: 9, kind: output, shape index: {0}]
  %s10 = inlined_call_operand.hbm [shape: f32[1,1], index: 10, kind: output, shape index: {1}]
  %11 = xla_tuple %s9, %s10
  %s12 = sld [smem:[#allocation0]]
  $region54: #{ac_crop_discriminator_forward.1} parent=0
    _
  %s14 = ssub.s32 1, %s12
  %s15 = scalar_select 0, %s14, %s12
  $region1: #{ac_crop_discriminator_forward.1} parent=0
    #allocation3 [shape = 'u8[512]{0}', space=vmem, size = 0x400, scoped, tag = 'output window, operand 1, single buffered']
    #allocation4 [shape = 's32[1]{0}', space=sflag, size = 0x4, scoped, tag = 'scoped memory for ac_crop_discriminator_forward.1']
    %16 = vsyncpa [#allocation4], 0
    // Predicated region
    $region2: #{ac_crop_discriminator_forward.1} parent=1 // pred_check
      _
    $region3: #{ac_crop_discriminator_forward.1} parent=1 // pred_check_branch
      %18 = sbr.rel (0) target = $region5
    $region4: #{ac_crop_discriminator_forward.1} parent=1 // pred_region
      _
    $region5: #{ac_crop_discriminator_forward.1} parent=1 // pred_fallthru
      _
    // Predicated region
    $region6: #{ac_crop_discriminator_forward.1} parent=1 // pred_check
      _
    $region7: #{ac_crop_discriminator_forward.1} parent=1 // pred_check_branch
      %20 = sbr.rel (0) target = $region9
    $region8: #{ac_crop_discriminator_forward.1} parent=1 // pred_region
      _
    $region9: #{ac_crop_discriminator_forward.1} parent=1 // pred_fallthru
      _
    // Predicated region
    $region10: #{ac_crop_discriminator_forward.1} parent=1 // pred_check
      _
    $region11: #{ac_crop_discriminator_forward.1} parent=1 // pred_check_branch
      %22 = sbr.rel (0) target = $region13
    $region12: #{ac_crop_discriminator_forward.1} parent=1 // pred_region
      _
    $region13: #{ac_crop_discriminator_forward.1} parent=1 // pred_fallthru
      _
    // Predicated region
    $region14: #{ac_crop_discriminator_forward.1} parent=1 // pred_check
      _
    $region15: #{ac_crop_discriminator_forward.1} parent=1 // pred_check_branch
      %24 = sbr.rel (0) target = $region17
    $region16: #{ac_crop_discriminator_forward.1} parent=1 // pred_region
      _
    $region17: #{ac_crop_discriminator_forward.1} parent=1 // pred_fallthru
      _
    // Predicated region
    $region18: #{ac_crop_discriminator_forward.1} parent=1 // pred_check
      _
    $region19: #{ac_crop_discriminator_forward.1} parent=1 // pred_check_branch
      %26 = sbr.rel (0) target = $region21
    $region20: #{ac_crop_discriminator_forward.1} parent=1 // pred_region
      _
    $region21: #{ac_crop_discriminator_forward.1} parent=1 // pred_fallthru
      _
    // Predicated region
    $region22: #{ac_crop_discriminator_forward.1} parent=1 // pred_check
      _
    $region23: #{ac_crop_discriminator_forward.1} parent=1 // pred_check_branch
      %28 = sbr.rel (0) target = $region25
    $region24: #{ac_crop_discriminator_forward.1} parent=1 // pred_region
      _
    $region25: #{ac_crop_discriminator_forward.1} parent=1 // pred_fallthru
      _
    // Predicated region
    $region26: #{ac_crop_discriminator_forward.1} parent=1 // pred_check
      _
    $region27: #{ac_crop_discriminator_forward.1} parent=1 // pred_check_branch
      %30 = sbr.rel (0) target = $region29
    $region28: #{ac_crop_discriminator_forward.1} parent=1 // pred_region
      _
    $region29: #{ac_crop_discriminator_forward.1} parent=1 // pred_fallthru
      _
    // Predicated region
    $region30: #{ac_crop_discriminator_forward.1} parent=1 // pred_check
      _
    $region31: #{ac_crop_discriminator_forward.1} parent=1 // pred_check_branch
      %32 = sbr.rel (0) target = $region33
    $region32: #{ac_crop_discriminator_forward.1} parent=1 // pred_region
      _
    $region33: #{ac_crop_discriminator_forward.1} parent=1 // pred_fallthru
      _
    // Predicated region
    $region34: #{ac_crop_discriminator_forward.1} parent=1 // pred_check
      _
    $region35: #{ac_crop_discriminator_forward.1} parent=1 // pred_check_branch
      %34 = sbr.rel (0) target = $region37
    $region36: #{ac_crop_discriminator_forward.1} parent=1 // pred_region
      _
    $region37: #{ac_crop_discriminator_forward.1} parent=1 // pred_fallthru
      _
    %v35 = vld [vmem:[%s0] sm:$0x77]
    %v36 = vld [vmem:[%s1] sm:$0xff]
    %v37 = vld [vmem:[%s1 + $0x8] sm:$0xff]
    %v38 = vld [vmem:[%s1 + $0x10] sm:$0xff]
    %v39 = vld [vmem:[%s1 + $0x18] sm:$0xff]
    %v40 = vld [vmem:[%s1 + $0x20] sm:$0xff]
    %v41 = vld [vmem:[%s1 + $0x28] sm:$0xff]
    %v42 = vld [vmem:[%s1 + $0x30] sm:$0xff]
    %v43 = vld [vmem:[%s1 + $0x38] sm:$0xff]
    %v44 = vld [vmem:[%s1 + $0x40] sm:$0xff]
    %v45 = vld [vmem:[%s1 + $0x48] sm:$0xff]
    %v46 = vld [vmem:[%s1 + $0x50] sm:$0xff]
    %v47 = vld [vmem:[%s1 + $0x58] sm:$0xff]
    %v48 = vld [vmem:[%s1 + $0x60] sm:$0xff]
    %v49 = vld [vmem:[%s1 + $0x68] sm:$0xff]
    %v50 = vld [vmem:[%s1 + $0x70] sm:$0xff]
    %v51 = vld [vmem:[%s1 + $0x78] sm:$0xff]
    %v52 = vld [vmem:[%s1 + $0x80] sm:$0xff]
    %v53 = vld [vmem:[%s1 + $0x88] sm:$0xff]
    %v54 = vld [vmem:[%s1 + $0x90] sm:$0xff]
    %v55 = vld [vmem:[%s1 + $0x98] sm:$0xff]
    %v56 = vld [vmem:[%s1 + $0xa0] sm:$0xff]
    %v57 = vld [vmem:[%s1 + $0xa8] sm:$0xff]
    %v58 = vld [vmem:[%s1 + $0xb0] sm:$0xff]
    %v59 = vld [vmem:[%s1 + $0xb8] sm:$0xff]
    %v60 = vld [vmem:[%s1 + $0xc0] sm:$0xff]
    %v61 = vld [vmem:[%s1 + $0xc8] sm:$0xff]
    %v62 = vld [vmem:[%s1 + $0xd0] sm:$0xff]
    %v63 = vld [vmem:[%s1 + $0xd8] sm:$0xff]
    %v64 = vld [vmem:[%s1 + $0xe0] sm:$0xff]
    %v65 = vld [vmem:[%s1 + $0xe8] sm:$0xff]
    %v66 = vld [vmem:[%s1 + $0xf0] sm:$0xff]
    %v67 = vld [vmem:[%s1 + $0xf8] sm:$0xff]
    %v69 = vcombine.high %v35, %v35
    %71 = vmatprep.subr.mxu0 0.0
    %72 = vmatpush1.msra.mxu0 %v36
    %73 = vmatprep.subr.mxu0 0.0
    %74 = vmatpush1.msra.mxu0 %v37
    %75 = vmatprep.subr.mxu0 0.0
    %76 = vmatpush1.msra.mxu0 %v38
    %77 = vmatprep.subr.mxu0 0.0
    %78 = vmatpush1.msra.mxu0 %v39
    %79 = vmatprep.subr.mxu0 0.0
    %80 = vmatpush1.msra.mxu0 %v40
    %81 = vmatprep.subr.mxu0 0.0
    %82 = vmatpush1.msra.mxu0 %v41
    %83 = vmatprep.subr.mxu0 0.0
    %84 = vmatpush1.msra.mxu0 %v42
    %85 = vmatprep.subr.mxu0 0.0
    %86 = vmatpush1.msra.mxu0 %v43
    %87 = vmatprep.subr.mxu0 0.0
    %88 = vmatpush1.msra.mxu0 %v44
    %89 = vmatprep.subr.mxu0 0.0
    %90 = vmatpush1.msra.mxu0 %v45
    %91 = vmatprep.subr.mxu0 0.0
    %92 = vmatpush1.msra.mxu0 %v46
    %93 = vmatprep.subr.mxu0 0.0
    %94 = vmatpush1.msra.mxu0 %v47
    %95 = vmatprep.subr.mxu0 0.0
    %96 = vmatpush1.msra.mxu0 %v48
    %97 = vmatprep.subr.mxu0 0.0
    %98 = vmatpush1.msra.mxu0 %v49
    %99 = vmatprep.subr.mxu0 0.0
    %100 = vmatpush1.msra.mxu0 %v50
    %101 = vmatprep.subr.mxu0 0.0
    %102 = vmatpush1.msra.mxu0 %v51
    %103 = vmatprep.subr.mxu0 0.0
    %104 = vmatpush1.msra.mxu0 %v52
    %105 = vmatprep.subr.mxu0 0.0
    %106 = vmatpush1.msra.mxu0 %v53
    %107 = vmatprep.subr.mxu0 0.0
    %108 = vmatpush1.msra.mxu0 %v54
    %109 = vmatprep.subr.mxu0 0.0
    %110 = vmatpush1.msra.mxu0 %v55
    %111 = vmatprep.subr.mxu0 0.0
    %112 = vmatpush1.msra.mxu0 %v56
    %113 = vmatprep.subr.mxu0 0.0
    %114 = vmatpush1.msra.mxu0 %v57
    %115 = vmatprep.subr.mxu0 0.0
    %116 = vmatpush1.msra.mxu0 %v58
    %117 = vmatprep.subr.mxu0 0.0
    %118 = vmatpush1.msra.mxu0 %v59
    %119 = vmatprep.subr.mxu0 0.0
    %120 = vmatpush1.msra.mxu0 %v60
    %121 = vmatprep.subr.mxu0 0.0
    %122 = vmatpush1.msra.mxu0 %v61
    %123 = vmatprep.subr.mxu0 0.0
    %124 = vmatpush1.msra.mxu0 %v62
    %125 = vmatprep.subr.mxu0 0.0
    %126 = vmatpush1.msra.mxu0 %v63
    %127 = vmatprep.subr.mxu0 0.0
    %128 = vmatpush1.msra.mxu0 %v64
    %129 = vmatprep.subr.mxu0 0.0
    %130 = vmatpush1.msra.mxu0 %v65
    %131 = vmatprep.subr.mxu0 0.0
    %132 = vmatpush1.msra.mxu0 %v66
    %133 = vmatprep.subr.mxu0 0.0
    %134 = vmatpush1.msra.mxu0 %v67
    %135 = vmatprep.mubr.f32.mxu0 %v69
    %136 = vmatmul.mubr.f32.gmra.mrb[0].mxu0 %v35
    %v137 = vpop.f32.mrb[0].mxu0
    %v138 = vadd.f32 0.0, %v137
    %v139 = vpop.f32.mrb[0].mxu0
    %140 = vdwg.mxu0
    %vm141 = vcmask 516096
    %142 = vst.msk [vmem:[#allocation2] sm:$0x1] %vm141, %v138
    %s143 = scalar_lea.vmem [#allocation2], 8
    %vm144 = vcmask 517121
    %145 = vst.msk [vmem:[%s143 - $0x1] sm:$0x2] %vm144, %v138
    %s146 = scalar_lea.vmem [#allocation2], 16
    %vm147 = vcmask 518146
    %148 = vst.msk [vmem:[%s146 - $0x2] sm:$0x4] %vm147, %v138
    %s149 = scalar_lea.vmem %s0, 8
    %v150 = vld [vmem:[%s149] sm:$0x77]
    %s151 = scalar_lea.vmem %s1, 256
    %v152 = vld [vmem:[%s151] sm:$0xff]
    %v153 = vld [vmem:[%s151 + $0x8] sm:$0xff]
    %v154 = vld [vmem:[%s151 + $0x10] sm:$0xff]
    %v155 = vld [vmem:[%s151 + $0x18] sm:$0xff]
    %v156 = vld [vmem:[%s151 + $0x20] sm:$0xff]
    %v157 = vld [vmem:[%s151 + $0x28] sm:$0xff]
    %v158 = vld [vmem:[%s151 + $0x30] sm:$0xff]
    %v159 = vld [vmem:[%s151 + $0x38] sm:$0xff]
    %v160 = vld [vmem:[%s151 + $0x40] sm:$0xff]
    %v161 = vld [vmem:[%s151 + $0x48] sm:$0xff]
    %v162 = vld [vmem:[%s151 + $0x50] sm:$0xff]
    %v163 = vld [vmem:[%s151 + $0x58] sm:$0xff]
    %v164 = vld [vmem:[%s151 + $0x60] sm:$0xff]
    %v165 = vld [vmem:[%s151 + $0x68] sm:$0xff]
    %v166 = vld [vmem:[%s151 + $0x70] sm:$0xff]
    %v167 = vld [vmem:[%s151 + $0x78] sm:$0xff]
    %v168 = vld [vmem:[%s151 + $0x80] sm:$0xff]
    %v169 = vld [vmem:[%s151 + $0x88] sm:$0xff]
    %v170 = vld [vmem:[%s151 + $0x90] sm:$0xff]
    %v171 = vld [vmem:[%s151 + $0x98] sm:$0xff]
    %v172 = vld [vmem:[%s151 + $0xa0] sm:$0xff]
    %v173 = vld [vmem:[%s151 + $0xa8] sm:$0xff]
    %v174 = vld [vmem:[%s151 + $0xb0] sm:$0xff]
    %v175 = vld [vmem:[%s151 + $0xb8] sm:$0xff]
    %v176 = vld [vmem:[%s151 + $0xc0] sm:$0xff]
    %v177 = vld [vmem:[%s151 + $0xc8] sm:$0xff]
    %v178 = vld [vmem:[%s151 + $0xd0] sm:$0xff]
    %v179 = vld [vmem:[%s151 + $0xd8] sm:$0xff]
    %v180 = vld [vmem:[%s151 + $0xe0] sm:$0xff]
    %v181 = vld [vmem:[%s151 + $0xe8] sm:$0xff]
    %v182 = vld [vmem:[%s151 + $0xf0] sm:$0xff]
    %v183 = vld [vmem:[%s151 + $0xf8] sm:$0xff]
    %v185 = vcombine.high %v150, %v150
    %187 = vmatprep.subr.mxu0 0.0
    %188 = vmatpush1.msra.mxu0 %v152
    %189 = vmatprep.subr.mxu0 0.0
    %190 = vmatpush1.msra.mxu0 %v153
    %191 = vmatprep.subr.mxu0 0.0
    %192 = vmatpush1.msra.mxu0 %v154
    %193 = vmatprep.subr.mxu0 0.0
    %194 = vmatpush1.msra.mxu0 %v155
    %195 = vmatprep.subr.mxu0 0.0
    %196 = vmatpush1.msra.mxu0 %v156
    %197 = vmatprep.subr.mxu0 0.0
    %198 = vmatpush1.msra.mxu0 %v157
    %199 = vmatprep.subr.mxu0 0.0
    %200 = vmatpush1.msra.mxu0 %v158
    %201 = vmatprep.subr.mxu0 0.0
    %202 = vmatpush1.msra.mxu0 %v159
    %203 = vmatprep.subr.mxu0 0.0
    %204 = vmatpush1.msra.mxu0 %v160
    %205 = vmatprep.subr.mxu0 0.0
    %206 = vmatpush1.msra.mxu0 %v161
    %207 = vmatprep.subr.mxu0 0.0
    %208 = vmatpush1.msra.mxu0 %v162
    %209 = vmatprep.subr.mxu0 0.0
    %210 = vmatpush1.msra.mxu0 %v163
    %211 = vmatprep.subr.mxu0 0.0
    %212 = vmatpush1.msra.mxu0 %v164
    %213 = vmatprep.subr.mxu0 0.0
    %214 = vmatpush1.msra.mxu0 %v165
    %215 = vmatprep.subr.mxu0 0.0
    %216 = vmatpush1.msra.mxu0 %v166
    %217 = vmatprep.subr.mxu0 0.0
    %218 = vmatpush1.msra.mxu0 %v167
    %219 = vmatprep.subr.mxu0 0.0
    %220 = vmatpush1.msra.mxu0 %v168
    %221 = vmatprep.subr.mxu0 0.0
    %222 = vmatpush1.msra.mxu0 %v169
    %223 = vmatprep.subr.mxu0 0.0
    %224 = vmatpush1.msra.mxu0 %v170
    %225 = vmatprep.subr.mxu0 0.0
    %226 = vmatpush1.msra.mxu0 %v171
    %227 = vmatprep.subr.mxu0 0.0
    %228 = vmatpush1.msra.mxu0 %v172
    %229 = vmatprep.subr.mxu0 0.0
    %230 = vmatpush1.msra.mxu0 %v173
    %231 = vmatprep.subr.mxu0 0.0
    %232 = vmatpush1.msra.mxu0 %v174
    %233 = vmatprep.subr.mxu0 0.0
    %234 = vmatpush1.msra.mxu0 %v175
    %235 = vmatprep.subr.mxu0 0.0
    %236 = vmatpush1.msra.mxu0 %v176
    %237 = vmatprep.subr.mxu0 0.0
    %238 = vmatpush1.msra.mxu0 %v177
    %239 = vmatprep.subr.mxu0 0.0
    %240 = vmatpush1.msra.mxu0 %v178
    %241 = vmatprep.subr.mxu0 0.0
    %242 = vmatpush1.msra.mxu0 %v179
    %243 = vmatprep.subr.mxu0 0.0
    %244 = vmatpush1.msra.mxu0 %v180
    %245 = vmatprep.subr.mxu0 0.0
    %246 = vmatpush1.msra.mxu0 %v181
    %247 = vmatprep.subr.mxu0 0.0
    %248 = vmatpush1.msra.mxu0 %v182
    %249 = vmatprep.subr.mxu0 0.0
    %250 = vmatpush1.msra.mxu0 %v183
    %251 = vmatprep.mubr.f32.mxu0 %v185
    %252 = vmatmul.mubr.f32.gmra.mrb[0].mxu0 %v150
    %v253 = vpop.f32.mrb[0].mxu0
    %v254 = vadd.f32 0.0, %v253
    %v255 = vpop.f32.mrb[0].mxu0
    %256 = vdwg.mxu0
    %257 = vst.msk [vmem:[#allocation2 + $0x1] sm:$0x1] %vm141, %v254
    %258 = vst.msk [vmem:[%s143] sm:$0x2] %vm144, %v254
    %259 = vst.msk [vmem:[%s146 - $0x1] sm:$0x4] %vm147, %v254
    %s260 = scalar_lea.vmem %s0, 16
    %v261 = vld [vmem:[%s260] sm:$0x77]
    %s262 = scalar_lea.vmem %s1, 512
    %v263 = vld [vmem:[%s262] sm:$0xff]
    %v264 = vld [vmem:[%s262 + $0x8] sm:$0xff]
    %v265 = vld [vmem:[%s262 + $0x10] sm:$0xff]
    %v266 = vld [vmem:[%s262 + $0x18] sm:$0xff]
    %v267 = vld [vmem:[%s262 + $0x20] sm:$0xff]
    %v268 = vld [vmem:[%s262 + $0x28] sm:$0xff]
    %v269 = vld [vmem:[%s262 + $0x30] sm:$0xff]
    %v270 = vld [vmem:[%s262 + $0x38] sm:$0xff]
    %v271 = vld [vmem:[%s262 + $0x40] sm:$0xff]
    %v272 = vld [vmem:[%s262 + $0x48] sm:$0xff]
    %v273 = vld [vmem:[%s262 + $0x50] sm:$0xff]
    %v274 = vld [vmem:[%s262 + $0x58] sm:$0xff]
    %v275 = vld [vmem:[%s262 + $0x60] sm:$0xff]
    %v276 = vld [vmem:[%s262 + $0x68] sm:$0xff]
    %v277 = vld [vmem:[%s262 + $0x70] sm:$0xff]
    %v278 = vld [vmem:[%s262 + $0x78] sm:$0xff]
    %v279 = vld [vmem:[%s262 + $0x80] sm:$0xff]
    %v280 = vld [vmem:[%s262 + $0x88] sm:$0xff]
    %v281 = vld [vmem:[%s262 + $0x90] sm:$0xff]
    %v282 = vld [vmem:[%s262 + $0x98] sm:$0xff]
    %v283 = vld [vmem:[%s262 + $0xa0] sm:$0xff]
    %v284 = vld [vmem:[%s262 + $0xa8] sm:$0xff]
    %v285 = vld [vmem:[%s262 + $0xb0] sm:$0xff]
    %v286 = vld [vmem:[%s262 + $0xb8] sm:$0xff]
    %v287 = vld [vmem:[%s262 + $0xc0] sm:$0xff]
    %v288 = vld [vmem:[%s262 + $0xc8] sm:$0xff]
    %v289 = vld [vmem:[%s262 + $0xd0] sm:$0xff]
    %v290 = vld [vmem:[%s262 + $0xd8] sm:$0xff]
    %v291 = vld [vmem:[%s262 + $0xe0] sm:$0xff]
    %v292 = vld [vmem:[%s262 + $0xe8] sm:$0xff]
    %v293 = vld [vmem:[%s262 + $0xf0] sm:$0xff]
    %v294 = vld [vmem:[%s262 + $0xf8] sm:$0xff]
    %v296 = vcombine.high %v261, %v261
    %298 = vmatprep.subr.mxu0 0.0
    %299 = vmatpush1.msra.mxu0 %v263
    %300 = vmatprep.subr.mxu0 0.0
    %301 = vmatpush1.msra.mxu0 %v264
    %302 = vmatprep.subr.mxu0 0.0
    %303 = vmatpush1.msra.mxu0 %v265
    %304 = vmatprep.subr.mxu0 0.0
    %305 = vmatpush1.msra.mxu0 %v266
    %306 = vmatprep.subr.mxu0 0.0
    %307 = vmatpush1.msra.mxu0 %v267
    %308 = vmatprep.subr.mxu0 0.0
    %309 = vmatpush1.msra.mxu0 %v268
    %310 = vmatprep.subr.mxu0 0.0
    %311 = vmatpush1.msra.mxu0 %v269
    %312 = vmatprep.subr.mxu0 0.0
    %313 = vmatpush1.msra.mxu0 %v270
    %314 = vmatprep.subr.mxu0 0.0
    %315 = vmatpush1.msra.mxu0 %v271
    %316 = vmatprep.subr.mxu0 0.0
    %317 = vmatpush1.msra.mxu0 %v272
    %318 = vmatprep.subr.mxu0 0.0
    %319 = vmatpush1.msra.mxu0 %v273
    %320 = vmatprep.subr.mxu0 0.0
    %321 = vmatpush1.msra.mxu0 %v274
    %322 = vmatprep.subr.mxu0 0.0
    %323 = vmatpush1.msra.mxu0 %v275
    %324 = vmatprep.subr.mxu0 0.0
    %325 = vmatpush1.msra.mxu0 %v276
    %326 = vmatprep.subr.mxu0 0.0
    %327 = vmatpush1.msra.mxu0 %v277
    %328 = vmatprep.subr.mxu0 0.0
    %329 = vmatpush1.msra.mxu0 %v278
    %330 = vmatprep.subr.mxu0 0.0
    %331 = vmatpush1.msra.mxu0 %v279
    %332 = vmatprep.subr.mxu0 0.0
    %333 = vmatpush1.msra.mxu0 %v280
    %334 = vmatprep.subr.mxu0 0.0
    %335 = vmatpush1.msra.mxu0 %v281
    %336 = vmatprep.subr.mxu0 0.0
    %337 = vmatpush1.msra.mxu0 %v282
    %338 = vmatprep.subr.mxu0 0.0
    %339 = vmatpush1.msra.mxu0 %v283
    %340 = vmatprep.subr.mxu0 0.0
    %341 = vmatpush1.msra.mxu0 %v284
    %342 = vmatprep.subr.mxu0 0.0
    %343 = vmatpush1.msra.mxu0 %v285
    %344 = vmatprep.subr.mxu0 0.0
    %345 = vmatpush1.msra.mxu0 %v286
    %346 = vmatprep.subr.mxu0 0.0
    %347 = vmatpush1.msra.mxu0 %v287
    %348 = vmatprep.subr.mxu0 0.0
    %349 = vmatpush1.msra.mxu0 %v288
    %350 = vmatprep.subr.mxu0 0.0
    %351 = vmatpush1.msra.mxu0 %v289
    %352 = vmatprep.subr.mxu0 0.0
    %353 = vmatpush1.msra.mxu0 %v290
    %354 = vmatprep.subr.mxu0 0.0
    %355 = vmatpush1.msra.mxu0 %v291
    %356 = vmatprep.subr.mxu0 0.0
    %357 = vmatpush1.msra.mxu0 %v292
    %358 = vmatprep.subr.mxu0 0.0
    %359 = vmatpush1.msra.mxu0 %v293
    %360 = vmatprep.subr.mxu0 0.0
    %361 = vmatpush1.msra.mxu0 %v294
    %362 = vmatprep.mubr.f32.mxu0 %v296
    %363 = vmatmul.mubr.f32.gmra.mrb[0].mxu0 %v261
    %v364 = vpop.f32.mrb[0].mxu0
    %v365 = vadd.f32 0.0, %v364
    %v366 = vpop.f32.mrb[0].mxu0
    %367 = vdwg.mxu0
    %368 = vst.msk [vmem:[#allocation2 + $0x2] sm:$0x1] %vm141, %v365
    %369 = vst.msk [vmem:[%s143 + $0x1] sm:$0x2] %vm144, %v365
    %370 = vst.msk [vmem:[%s146] sm:$0x4] %vm147, %v365
    %s371 = scalar_lea.vmem %s0, 24
    %v372 = vld [vmem:[%s371] sm:$0x77]
    %s373 = scalar_lea.vmem %s1, 768
    %v374 = vld [vmem:[%s373] sm:$0xff]
    %v375 = vld [vmem:[%s373 + $0x8] sm:$0xff]
    %v376 = vld [vmem:[%s373 + $0x10] sm:$0xff]
    %v377 = vld [vmem:[%s373 + $0x18] sm:$0xff]
    %v378 = vld [vmem:[%s373 + $0x20] sm:$0xff]
    %v379 = vld [vmem:[%s373 + $0x28] sm:$0xff]
    %v380 = vld [vmem:[%s373 + $0x30] sm:$0xff]
    %v381 = vld [vmem:[%s373 + $0x38] sm:$0xff]
    %v382 = vld [vmem:[%s373 + $0x40] sm:$0xff]
    %v383 = vld [vmem:[%s373 + $0x48] sm:$0xff]
    %v384 = vld [vmem:[%s373 + $0x50] sm:$0xff]
    %v385 = vld [vmem:[%s373 + $0x58] sm:$0xff]
    %v386 = vld [vmem:[%s373 + $0x60] sm:$0xff]
    %v387 = vld [vmem:[%s373 + $0x68] sm:$0xff]
    %v388 = vld [vmem:[%s373 + $0x70] sm:$0xff]
    %v389 = vld [vmem:[%s373 + $0x78] sm:$0xff]
    %v390 = vld [vmem:[%s373 + $0x80] sm:$0xff]
    %v391 = vld [vmem:[%s373 + $0x88] sm:$0xff]
    %v392 = vld [vmem:[%s373 + $0x90] sm:$0xff]
    %v393 = vld [vmem:[%s373 + $0x98] sm:$0xff]
    %v394 = vld [vmem:[%s373 + $0xa0] sm:$0xff]
    %v395 = vld [vmem:[%s373 + $0xa8] sm:$0xff]
    %v396 = vld [vmem:[%s373 + $0xb0] sm:$0xff]
    %v397 = vld [vmem:[%s373 + $0xb8] sm:$0xff]
    %v398 = vld [vmem:[%s373 + $0xc0] sm:$0xff]
    %v399 = vld [vmem:[%s373 + $0xc8] sm:$0xff]
    %v400 = vld [vmem:[%s373 + $0xd0] sm:$0xff]
    %v401 = vld [vmem:[%s373 + $0xd8] sm:$0xff]
    %v402 = vld [vmem:[%s373 + $0xe0] sm:$0xff]
    %v403 = vld [vmem:[%s373 + $0xe8] sm:$0xff]
    %v404 = vld [vmem:[%s373 + $0xf0] sm:$0xff]
    %v405 = vld [vmem:[%s373 + $0xf8] sm:$0xff]
    %v407 = vcombine.high %v372, %v372
    %409 = vmatprep.subr.mxu0 0.0
    %410 = vmatpush1.msra.mxu0 %v374
    %411 = vmatprep.subr.mxu0 0.0
    %412 = vmatpush1.msra.mxu0 %v375
    %413 = vmatprep.subr.mxu0 0.0
    %414 = vmatpush1.msra.mxu0 %v376
    %415 = vmatprep.subr.mxu0 0.0
    %416 = vmatpush1.msra.mxu0 %v377
    %417 = vmatprep.subr.mxu0 0.0
    %418 = vmatpush1.msra.mxu0 %v378
    %419 = vmatprep.subr.mxu0 0.0
    %420 = vmatpush1.msra.mxu0 %v379
    %421 = vmatprep.subr.mxu0 0.0
    %422 = vmatpush1.msra.mxu0 %v380
    %423 = vmatprep.subr.mxu0 0.0
    %424 = vmatpush1.msra.mxu0 %v381
    %425 = vmatprep.subr.mxu0 0.0
    %426 = vmatpush1.msra.mxu0 %v382
    %427 = vmatprep.subr.mxu0 0.0
    %428 = vmatpush1.msra.mxu0 %v383
    %429 = vmatprep.subr.mxu0 0.0
    %430 = vmatpush1.msra.mxu0 %v384
    %431 = vmatprep.subr.mxu0 0.0
    %432 = vmatpush1.msra.mxu0 %v385
    %433 = vmatprep.subr.mxu0 0.0
    %434 = vmatpush1.msra.mxu0 %v386
    %435 = vmatprep.subr.mxu0 0.0
    %436 = vmatpush1.msra.mxu0 %v387
    %437 = vmatprep.subr.mxu0 0.0
    %438 = vmatpush1.msra.mxu0 %v388
    %439 = vmatprep.subr.mxu0 0.0
    %440 = vmatpush1.msra.mxu0 %v389
    %441 = vmatprep.subr.mxu0 0.0
    %442 = vmatpush1.msra.mxu0 %v390
    %443 = vmatprep.subr.mxu0 0.0
    %444 = vmatpush1.msra.mxu0 %v391
    %445 = vmatprep.subr.mxu0 0.0
    %446 = vmatpush1.msra.mxu0 %v392
    %447 = vmatprep.subr.mxu0 0.0
    %448 = vmatpush1.msra.mxu0 %v393
    %449 = vmatprep.subr.mxu0 0.0
    %450 = vmatpush1.msra.mxu0 %v394
    %451 = vmatprep.subr.mxu0 0.0
    %452 = vmatpush1.msra.mxu0 %v395
    %453 = vmatprep.subr.mxu0 0.0
    %454 = vmatpush1.msra.mxu0 %v396
    %455 = vmatprep.subr.mxu0 0.0
    %456 = vmatpush1.msra.mxu0 %v397
    %457 = vmatprep.subr.mxu0 0.0
    %458 = vmatpush1.msra.mxu0 %v398
    %459 = vmatprep.subr.mxu0 0.0
    %460 = vmatpush1.msra.mxu0 %v399
    %461 = vmatprep.subr.mxu0 0.0
    %462 = vmatpush1.msra.mxu0 %v400
    %463 = vmatprep.subr.mxu0 0.0
    %464 = vmatpush1.msra.mxu0 %v401
    %465 = vmatprep.subr.mxu0 0.0
    %466 = vmatpush1.msra.mxu0 %v402
    %467 = vmatprep.subr.mxu0 0.0
    %468 = vmatpush1.msra.mxu0 %v403
    %469 = vmatprep.subr.mxu0 0.0
    %470 = vmatpush1.msra.mxu0 %v404
    %471 = vmatprep.subr.mxu0 0.0
    %472 = vmatpush1.msra.mxu0 %v405
    %473 = vmatprep.mubr.f32.mxu0 %v407
    %474 = vmatmul.mubr.f32.gmra.mrb[0].mxu0 %v372
    %v475 = vpop.f32.mrb[0].mxu0
    %v476 = vadd.f32 0.0, %v475
    %v477 = vpop.f32.mrb[0].mxu0
    %478 = vdwg.mxu0
    %479 = vst.msk [vmem:[#allocation2 + $0x3] sm:$0x1] %vm141, %v476
    %480 = vst.msk [vmem:[%s143 + $0x2] sm:$0x2] %vm144, %v476
    %481 = vst.msk [vmem:[%s146 + $0x1] sm:$0x4] %vm147, %v476
    %s482 = scalar_lea.vmem %s0, 32
    %v483 = vld [vmem:[%s482] sm:$0x77]
    %s484 = scalar_lea.vmem %s1, 1024
    %v485 = vld [vmem:[%s484] sm:$0xff]
    %v486 = vld [vmem:[%s484 + $0x8] sm:$0xff]
    %v487 = vld [vmem:[%s484 + $0x10] sm:$0xff]
    %v488 = vld [vmem:[%s484 + $0x18] sm:$0xff]
    %v489 = vld [vmem:[%s484 + $0x20] sm:$0xff]
    %v490 = vld [vmem:[%s484 + $0x28] sm:$0xff]
    %v491 = vld [vmem:[%s484 + $0x30] sm:$0xff]
    %v492 = vld [vmem:[%s484 + $0x38] sm:$0xff]
    %v493 = vld [vmem:[%s484 + $0x40] sm:$0xff]
    %v494 = vld [vmem:[%s484 + $0x48] sm:$0xff]
    %v495 = vld [vmem:[%s484 + $0x50] sm:$0xff]
    %v496 = vld [vmem:[%s484 + $0x58] sm:$0xff]
    %v497 = vld [vmem:[%s484 + $0x60] sm:$0xff]
    %v498 = vld [vmem:[%s484 + $0x68] sm:$0xff]
    %v499 = vld [vmem:[%s484 + $0x70] sm:$0xff]
    %v500 = vld [vmem:[%s484 + $0x78] sm:$0xff]
    %v501 = vld [vmem:[%s484 + $0x80] sm:$0xff]
    %v502 = vld [vmem:[%s484 + $0x88] sm:$0xff]
    %v503 = vld [vmem:[%s484 + $0x90] sm:$0xff]
    %v504 = vld [vmem:[%s484 + $0x98] sm:$0xff]
    %v505 = vld [vmem:[%s484 + $0xa0] sm:$0xff]
    %v506 = vld [vmem:[%s484 + $0xa8] sm:$0xff]
    %v507 = vld [vmem:[%s484 + $0xb0] sm:$0xff]
    %v508 = vld [vmem:[%s484 + $0xb8] sm:$0xff]
    %v509 = vld [vmem:[%s484 + $0xc0] sm:$0xff]
    %v510 = vld [vmem:[%s484 + $0xc8] sm:$0xff]
    %v511 = vld [vmem:[%s484 + $0xd0] sm:$0xff]
    %v512 = vld [vmem:[%s484 + $0xd8] sm:$0xff]
    %v513 = vld [vmem:[%s484 + $0xe0] sm:$0xff]
    %v514 = vld [vmem:[%s484 + $0xe8] sm:$0xff]
    %v515 = vld [vmem:[%s484 + $0xf0] sm:$0xff]
    %v516 = vld [vmem:[%s484 + $0xf8] sm:$0xff]
    %v518 = vcombine.high %v483, %v483
    %520 = vmatprep.subr.mxu0 0.0
    %521 = vmatpush1.msra.mxu0 %v485
    %522 = vmatprep.subr.mxu0 0.0
    %523 = vmatpush1.msra.mxu0 %v486
    %524 = vmatprep.subr.mxu0 0.0
    %525 = vmatpush1.msra.mxu0 %v487
    %526 = vmatprep.subr.mxu0 0.0
    %527 = vmatpush1.msra.mxu0 %v488
    %528 = vmatprep.subr.mxu0 0.0
    %529 = vmatpush1.msra.mxu0 %v489
    %530 = vmatprep.subr.mxu0 0.0
    %531 = vmatpush1.msra.mxu0 %v490
    %532 = vmatprep.subr.mxu0 0.0
    %533 = vmatpush1.msra.mxu0 %v491
    %534 = vmatprep.subr.mxu0 0.0
    %535 = vmatpush1.msra.mxu0 %v492
    %536 = vmatprep.subr.mxu0 0.0
    %537 = vmatpush1.msra.mxu0 %v493
    %538 = vmatprep.subr.mxu0 0.0
    %539 = vmatpush1.msra.mxu0 %v494
    %540 = vmatprep.subr.mxu0 0.0
    %541 = vmatpush1.msra.mxu0 %v495
    %542 = vmatprep.subr.mxu0 0.0
    %543 = vmatpush1.msra.mxu0 %v496
    %544 = vmatprep.subr.mxu0 0.0
    %545 = vmatpush1.msra.mxu0 %v497
    %546 = vmatprep.subr.mxu0 0.0
    %547 = vmatpush1.msra.mxu0 %v498
    %548 = vmatprep.subr.mxu0 0.0
    %549 = vmatpush1.msra.mxu0 %v499
    %550 = vmatprep.subr.mxu0 0.0
    %551 = vmatpush1.msra.mxu0 %v500
    %552 = vmatprep.subr.mxu0 0.0
    %553 = vmatpush1.msra.mxu0 %v501
    %554 = vmatprep.subr.mxu0 0.0
    %555 = vmatpush1.msra.mxu0 %v502
    %556 = vmatprep.subr.mxu0 0.0
    %557 = vmatpush1.msra.mxu0 %v503
    %558 = vmatprep.subr.mxu0 0.0
    %559 = vmatpush1.msra.mxu0 %v504
    %560 = vmatprep.subr.mxu0 0.0
    %561 = vmatpush1.msra.mxu0 %v505
    %562 = vmatprep.subr.mxu0 0.0
    %563 = vmatpush1.msra.mxu0 %v506
    %564 = vmatprep.subr.mxu0 0.0
    %565 = vmatpush1.msra.mxu0 %v507
    %566 = vmatprep.subr.mxu0 0.0
    %567 = vmatpush1.msra.mxu0 %v508
    %568 = vmatprep.subr.mxu0 0.0
    %569 = vmatpush1.msra.mxu0 %v509
    %570 = vmatprep.subr.mxu0 0.0
    %571 = vmatpush1.msra.mxu0 %v510
    %572 = vmatprep.subr.mxu0 0.0
    %573 = vmatpush1.msra.mxu0 %v511
    %574 = vmatprep.subr.mxu0 0.0
    %575 = vmatpush1.msra.mxu0 %v512
    %576 = vmatprep.subr.mxu0 0.0
    %577 = vmatpush1.msra.mxu0 %v513
    %578 = vmatprep.subr.mxu0 0.0
    %579 = vmatpush1.msra.mxu0 %v514
    %580 = vmatprep.subr.mxu0 0.0
    %581 = vmatpush1.msra.mxu0 %v515
    %582 = vmatprep.subr.mxu0 0.0
    %583 = vmatpush1.msra.mxu0 %v516
    %584 = vmatprep.mubr.f32.mxu0 %v518
    %585 = vmatmul.mubr.f32.gmra.mrb[0].mxu0 %v483
    %v586 = vpop.f32.mrb[0].mxu0
    %v587 = vadd.f32 0.0, %v586
    %v588 = vpop.f32.mrb[0].mxu0
    %589 = vdwg.mxu0
    %590 = vst.msk [vmem:[#allocation2 + $0x4] sm:$0x1] %vm141, %v587
    %591 = vst.msk [vmem:[%s143 + $0x3] sm:$0x2] %vm144, %v587
    %592 = vst.msk [vmem:[%s146 + $0x2] sm:$0x4] %vm147, %v587
    %s593 = scalar_lea.vmem %s0, 40
    %v594 = vld [vmem:[%s593] sm:$0x77]
    %s595 = scalar_lea.vmem %s1, 1280
    %v596 = vld [vmem:[%s595] sm:$0xff]
    %v597 = vld [vmem:[%s595 + $0x8] sm:$0xff]
    %v598 = vld [vmem:[%s595 + $0x10] sm:$0xff]
    %v599 = vld [vmem:[%s595 + $0x18] sm:$0xff]
    %v600 = vld [vmem:[%s595 + $0x20] sm:$0xff]
    %v601 = vld [vmem:[%s595 + $0x28] sm:$0xff]
    %v602 = vld [vmem:[%s595 + $0x30] sm:$0xff]
    %v603 = vld [vmem:[%s595 + $0x38] sm:$0xff]
    %v604 = vld [vmem:[%s595 + $0x40] sm:$0xff]
    %v605 = vld [vmem:[%s595 + $0x48] sm:$0xff]
    %v606 = vld [vmem:[%s595 + $0x50] sm:$0xff]
    %v607 = vld [vmem:[%s595 + $0x58] sm:$0xff]
    %v608 = vld [vmem:[%s595 + $0x60] sm:$0xff]
    %v609 = vld [vmem:[%s595 + $0x68] sm:$0xff]
    %v610 = vld [vmem:[%s595 + $0x70] sm:$0xff]
    %v611 = vld [vmem:[%s595 + $0x78] sm:$0xff]
    %v612 = vld [vmem:[%s595 + $0x80] sm:$0xff]
    %v613 = vld [vmem:[%s595 + $0x88] sm:$0xff]
    %v614 = vld [vmem:[%s595 + $0x90] sm:$0xff]
    %v615 = vld [vmem:[%s595 + $0x98] sm:$0xff]
    %v616 = vld [vmem:[%s595 + $0xa0] sm:$0xff]
    %v617 = vld [vmem:[%s595 + $0xa8] sm:$0xff]
    %v618 = vld [vmem:[%s595 + $0xb0] sm:$0xff]
    %v619 = vld [vmem:[%s595 + $0xb8] sm:$0xff]
    %v620 = vld [vmem:[%s595 + $0xc0] sm:$0xff]
    %v621 = vld [vmem:[%s595 + $0xc8] sm:$0xff]
    %v622 = vld [vmem:[%s595 + $0xd0] sm:$0xff]
    %v623 = vld [vmem:[%s595 + $0xd8] sm:$0xff]
    %v624 = vld [vmem:[%s595 + $0xe0] sm:$0xff]
    %v625 = vld [vmem:[%s595 + $0xe8] sm:$0xff]
    %v626 = vld [vmem:[%s595 + $0xf0] sm:$0xff]
    %v627 = vld [vmem:[%s595 + $0xf8] sm:$0xff]
    %v629 = vcombine.high %v594, %v594
    %631 = vmatprep.subr.mxu0 0.0
    %632 = vmatpush1.msra.mxu0 %v596
    %633 = vmatprep.subr.mxu0 0.0
    %634 = vmatpush1.msra.mxu0 %v597
    %635 = vmatprep.subr.mxu0 0.0
    %636 = vmatpush1.msra.mxu0 %v598
    %637 = vmatprep.subr.mxu0 0.0
    %638 = vmatpush1.msra.mxu0 %v599
    %639 = vmatprep.subr.mxu0 0.0
    %640 = vmatpush1.msra.mxu0 %v600
    %641 = vmatprep.subr.mxu0 0.0
    %642 = vmatpush1.msra.mxu0 %v601
    %643 = vmatprep.subr.mxu0 0.0
    %644 = vmatpush1.msra.mxu0 %v602
    %645 = vmatprep.subr.mxu0 0.0
    %646 = vmatpush1.msra.mxu0 %v603
    %647 = vmatprep.subr.mxu0 0.0
    %648 = vmatpush1.msra.mxu0 %v604
    %649 = vmatprep.subr.mxu0 0.0
    %650 = vmatpush1.msra.mxu0 %v605
    %651 = vmatprep.subr.mxu0 0.0
    %652 = vmatpush1.msra.mxu0 %v606
    %653 = vmatprep.subr.mxu0 0.0
    %654 = vmatpush1.msra.mxu0 %v607
    %655 = vmatprep.subr.mxu0 0.0
    %656 = vmatpush1.msra.mxu0 %v608
    %657 = vmatprep.subr.mxu0 0.0
    %658 = vmatpush1.msra.mxu0 %v609
    %659 = vmatprep.subr.mxu0 0.0
    %660 = vmatpush1.msra.mxu0 %v610
    %661 = vmatprep.subr.mxu0 0.0
    %662 = vmatpush1.msra.mxu0 %v611
    %663 = vmatprep.subr.mxu0 0.0
    %664 = vmatpush1.msra.mxu0 %v612
    %665 = vmatprep.subr.mxu0 0.0
    %666 = vmatpush1.msra.mxu0 %v613
    %667 = vmatprep.subr.mxu0 0.0
    %668 = vmatpush1.msra.mxu0 %v614
    %669 = vmatprep.subr.mxu0 0.0
    %670 = vmatpush1.msra.mxu0 %v615
    %671 = vmatprep.subr.mxu0 0.0
    %672 = vmatpush1.msra.mxu0 %v616
    %673 = vmatprep.subr.mxu0 0.0
    %674 = vmatpush1.msra.mxu0 %v617
    %675 = vmatprep.subr.mxu0 0.0
    %676 = vmatpush1.msra.mxu0 %v618
    %677 = vmatprep.subr.mxu0 0.0
    %678 = vmatpush1.msra.mxu0 %v619
    %679 = vmatprep.subr.mxu0 0.0
    %680 = vmatpush1.msra.mxu0 %v620
    %681 = vmatprep.subr.mxu0 0.0
    %682 = vmatpush1.msra.mxu0 %v621
    %683 = vmatprep.subr.mxu0 0.0
    %684 = vmatpush1.msra.mxu0 %v622
    %685 = vmatprep.subr.mxu0 0.0
    %686 = vmatpush1.msra.mxu0 %v623
    %687 = vmatprep.subr.mxu0 0.0
    %688 = vmatpush1.msra.mxu0 %v624
    %689 = vmatprep.subr.mxu0 0.0
    %690 = vmatpush1.msra.mxu0 %v625
    %691 = vmatprep.subr.mxu0 0.0
    %692 = vmatpush1.msra.mxu0 %v626
    %693 = vmatprep.subr.mxu0 0.0
    %694 = vmatpush1.msra.mxu0 %v627
    %695 = vmatprep.mubr.f32.mxu0 %v629
    %696 = vmatmul.mubr.f32.gmra.mrb[0].mxu0 %v594
    %v697 = vpop.f32.mrb[0].mxu0
    %v698 = vadd.f32 0.0, %v697
    %v699 = vpop.f32.mrb[0].mxu0
    %700 = vdwg.mxu0
    %701 = vst.msk [vmem:[#allocation2 + $0x5] sm:$0x1] %vm141, %v698
    %702 = vst.msk [vmem:[%s143 + $0x4] sm:$0x2] %vm144, %v698
    %703 = vst.msk [vmem:[%s146 + $0x3] sm:$0x4] %vm147, %v698
    %s704 = scalar_lea.vmem %s0, 48
    %v705 = vld [vmem:[%s704] sm:$0x77]
    %s706 = scalar_lea.vmem %s1, 1536
    %v707 = vld [vmem:[%s706] sm:$0xff]
    %v708 = vld [vmem:[%s706 + $0x8] sm:$0xff]
    %v709 = vld [vmem:[%s706 + $0x10] sm:$0xff]
    %v710 = vld [vmem:[%s706 + $0x18] sm:$0xff]
    %v711 = vld [vmem:[%s706 + $0x20] sm:$0xff]
    %v712 = vld [vmem:[%s706 + $0x28] sm:$0xff]
    %v713 = vld [vmem:[%s706 + $0x30] sm:$0xff]
    %v714 = vld [vmem:[%s706 + $0x38] sm:$0xff]
    %v715 = vld [vmem:[%s706 + $0x40] sm:$0xff]
    %v716 = vld [vmem:[%s706 + $0x48] sm:$0xff]
    %v717 = vld [vmem:[%s706 + $0x50] sm:$0xff]
    %v718 = vld [vmem:[%s706 + $0x58] sm:$0xff]
    %v719 = vld [vmem:[%s706 + $0x60] sm:$0xff]
    %v720 = vld [vmem:[%s706 + $0x68] sm:$0xff]
    %v721 = vld [vmem:[%s706 + $0x70] sm:$0xff]
    %v722 = vld [vmem:[%s706 + $0x78] sm:$0xff]
    %v723 = vld [vmem:[%s706 + $0x80] sm:$0xff]
    %v724 = vld [vmem:[%s706 + $0x88] sm:$0xff]
    %v725 = vld [vmem:[%s706 + $0x90] sm:$0xff]
    %v726 = vld [vmem:[%s706 + $0x98] sm:$0xff]
    %v727 = vld [vmem:[%s706 + $0xa0] sm:$0xff]
    %v728 = vld [vmem:[%s706 + $0xa8] sm:$0xff]
    %v729 = vld [vmem:[%s706 + $0xb0] sm:$0xff]
    %v730 = vld [vmem:[%s706 + $0xb8] sm:$0xff]
    %v731 = vld [vmem:[%s706 + $0xc0] sm:$0xff]
    %v732 = vld [vmem:[%s706 + $0xc8] sm:$0xff]
    %v733 = vld [vmem:[%s706 + $0xd0] sm:$0xff]
    %v734 = vld [vmem:[%s706 + $0xd8] sm:$0xff]
    %v735 = vld [vmem:[%s706 + $0xe0] sm:$0xff]
    %v736 = vld [vmem:[%s706 + $0xe8] sm:$0xff]
    %v737 = vld [vmem:[%s706 + $0xf0] sm:$0xff]
    %v738 = vld [vmem:[%s706 + $0xf8] sm:$0xff]
    %v740 = vcombine.high %v705, %v705
    %742 = vmatprep.subr.mxu0 0.0
    %743 = vmatpush1.msra.mxu0 %v707
    %744 = vmatprep.subr.mxu0 0.0
    %745 = vmatpush1.msra.mxu0 %v708
    %746 = vmatprep.subr.mxu0 0.0
    %747 = vmatpush1.msra.mxu0 %v709
    %748 = vmatprep.subr.mxu0 0.0
    %749 = vmatpush1.msra.mxu0 %v710
    %750 = vmatprep.subr.mxu0 0.0
    %751 = vmatpush1.msra.mxu0 %v711
    %752 = vmatprep.subr.mxu0 0.0
    %753 = vmatpush1.msra.mxu0 %v712
    %754 = vmatprep.subr.mxu0 0.0
    %755 = vmatpush1.msra.mxu0 %v713
    %756 = vmatprep.subr.mxu0 0.0
    %757 = vmatpush1.msra.mxu0 %v714
    %758 = vmatprep.subr.mxu0 0.0
    %759 = vmatpush1.msra.mxu0 %v715
    %760 = vmatprep.subr.mxu0 0.0
    %761 = vmatpush1.msra.mxu0 %v716
    %762 = vmatprep.subr.mxu0 0.0
    %763 = vmatpush1.msra.mxu0 %v717
    %764 = vmatprep.subr.mxu0 0.0
    %765 = vmatpush1.msra.mxu0 %v718
    %766 = vmatprep.subr.mxu0 0.0
    %767 = vmatpush1.msra.mxu0 %v719
    %768 = vmatprep.subr.mxu0 0.0
    %769 = vmatpush1.msra.mxu0 %v720
    %770 = vmatprep.subr.mxu0 0.0
    %771 = vmatpush1.msra.mxu0 %v721
    %772 = vmatprep.subr.mxu0 0.0
    %773 = vmatpush1.msra.mxu0 %v722
    %774 = vmatprep.subr.mxu0 0.0
    %775 = vmatpush1.msra.mxu0 %v723
    %776 = vmatprep.subr.mxu0 0.0
    %777 = vmatpush1.msra.mxu0 %v724
    %778 = vmatprep.subr.mxu0 0.0
    %779 = vmatpush1.msra.mxu0 %v725
    %780 = vmatprep.subr.mxu0 0.0
    %781 = vmatpush1.msra.mxu0 %v726
    %782 = vmatprep.subr.mxu0 0.0
    %783 = vmatpush1.msra.mxu0 %v727
    %784 = vmatprep.subr.mxu0 0.0
    %785 = vmatpush1.msra.mxu0 %v728
    %786 = vmatprep.subr.mxu0 0.0
    %787 = vmatpush1.msra.mxu0 %v729
    %788 = vmatprep.subr.mxu0 0.0
    %789 = vmatpush1.msra.mxu0 %v730
    %790 = vmatprep.subr.mxu0 0.0
    %791 = vmatpush1.msra.mxu0 %v731
    %792 = vmatprep.subr.mxu0 0.0
    %793 = vmatpush1.msra.mxu0 %v732
    %794 = vmatprep.subr.mxu0 0.0
    %795 = vmatpush1.msra.mxu0 %v733
    %796 = vmatprep.subr.mxu0 0.0
    %797 = vmatpush1.msra.mxu0 %v734
    %798 = vmatprep.subr.mxu0 0.0
    %799 = vmatpush1.msra.mxu0 %v735
    %800 = vmatprep.subr.mxu0 0.0
    %801 = vmatpush1.msra.mxu0 %v736
    %802 = vmatprep.subr.mxu0 0.0
    %803 = vmatpush1.msra.mxu0 %v737
    %804 = vmatprep.subr.mxu0 0.0
    %805 = vmatpush1.msra.mxu0 %v738
    %806 = vmatprep.mubr.f32.mxu0 %v740
    %807 = vmatmul.mubr.f32.gmra.mrb[0].mxu0 %v705
    %v808 = vpop.f32.mrb[0].mxu0
    %v809 = vadd.f32 0.0, %v808
    %v810 = vpop.f32.mrb[0].mxu0
    %811 = vdwg.mxu0
    %812 = vst.msk [vmem:[#allocation2 + $0x6] sm:$0x1] %vm141, %v809
    %813 = vst.msk [vmem:[%s143 + $0x5] sm:$0x2] %vm144, %v809
    %814 = vst.msk [vmem:[%s146 + $0x4] sm:$0x4] %vm147, %v809
    %s815 = scalar_lea.vmem %s0, 56
    %v816 = vld [vmem:[%s815] sm:$0x77]
    %s817 = scalar_lea.vmem %s1, 1792
    %v818 = vld [vmem:[%s817] sm:$0xff]
    %v819 = vld [vmem:[%s817 + $0x8] sm:$0xff]
    %v820 = vld [vmem:[%s817 + $0x10] sm:$0xff]
    %v821 = vld [vmem:[%s817 + $0x18] sm:$0xff]
    %v822 = vld [vmem:[%s817 + $0x20] sm:$0xff]
    %v823 = vld [vmem:[%s817 + $0x28] sm:$0xff]
    %v824 = vld [vmem:[%s817 + $0x30] sm:$0xff]
    %v825 = vld [vmem:[%s817 + $0x38] sm:$0xff]
    %v826 = vld [vmem:[%s817 + $0x40] sm:$0xff]
    %v827 = vld [vmem:[%s817 + $0x48] sm:$0xff]
    %v828 = vld [vmem:[%s817 + $0x50] sm:$0xff]
    %v829 = vld [vmem:[%s817 + $0x58] sm:$0xff]
    %v830 = vld [vmem:[%s817 + $0x60] sm:$0xff]
    %v831 = vld [vmem:[%s817 + $0x68] sm:$0xff]
    %v832 = vld [vmem:[%s817 + $0x70] sm:$0xff]
    %v833 = vld [vmem:[%s817 + $0x78] sm:$0xff]
    %v834 = vld [vmem:[%s817 + $0x80] sm:$0xff]
    %v835 = vld [vmem:[%s817 + $0x88] sm:$0xff]
    %v836 = vld [vmem:[%s817 + $0x90] sm:$0xff]
    %v837 = vld [vmem:[%s817 + $0x98] sm:$0xff]
    %v838 = vld [vmem:[%s817 + $0xa0] sm:$0xff]
    %v839 = vld [vmem:[%s817 + $0xa8] sm:$0xff]
    %v840 = vld [vmem:[%s817 + $0xb0] sm:$0xff]
    %v841 = vld [vmem:[%s817 + $0xb8] sm:$0xff]
    %v842 = vld [vmem:[%s817 + $0xc0] sm:$0xff]
    %v843 = vld [vmem:[%s817 + $0xc8] sm:$0xff]
    %v844 = vld [vmem:[%s817 + $0xd0] sm:$0xff]
    %v845 = vld [vmem:[%s817 + $0xd8] sm:$0xff]
    %v846 = vld [vmem:[%s817 + $0xe0] sm:$0xff]
    %v847 = vld [vmem:[%s817 + $0xe8] sm:$0xff]
    %v848 = vld [vmem:[%s817 + $0xf0] sm:$0xff]
    %v849 = vld [vmem:[%s817 + $0xf8] sm:$0xff]
    %v851 = vcombine.high %v816, %v816
    %853 = vmatprep.subr.mxu0 0.0
    %854 = vmatpush1.msra.mxu0 %v818
    %855 = vmatprep.subr.mxu0 0.0
    %856 = vmatpush1.msra.mxu0 %v819
    %857 = vmatprep.subr.mxu0 0.0
    %858 = vmatpush1.msra.mxu0 %v820
    %859 = vmatprep.subr.mxu0 0.0
    %860 = vmatpush1.msra.mxu0 %v821
    %861 = vmatprep.subr.mxu0 0.0
    %862 = vmatpush1.msra.mxu0 %v822
    %863 = vmatprep.subr.mxu0 0.0
    %864 = vmatpush1.msra.mxu0 %v823
    %865 = vmatprep.subr.mxu0 0.0
    %866 = vmatpush1.msra.mxu0 %v824
    %867 = vmatprep.subr.mxu0 0.0
    %868 = vmatpush1.msra.mxu0 %v825
    %869 = vmatprep.subr.mxu0 0.0
    %870 = vmatpush1.msra.mxu0 %v826
    %871 = vmatprep.subr.mxu0 0.0
    %872 = vmatpush1.msra.mxu0 %v827
    %873 = vmatprep.subr.mxu0 0.0
    %874 = vmatpush1.msra.mxu0 %v828
    %875 = vmatprep.subr.mxu0 0.0
    %876 = vmatpush1.msra.mxu0 %v829
    %877 = vmatprep.subr.mxu0 0.0
    %878 = vmatpush1.msra.mxu0 %v830
    %879 = vmatprep.subr.mxu0 0.0
    %880 = vmatpush1.msra.mxu0 %v831
    %881 = vmatprep.subr.mxu0 0.0
    %882 = vmatpush1.msra.mxu0 %v832
    %883 = vmatprep.subr.mxu0 0.0
    %884 = vmatpush1.msra.mxu0 %v833
    %885 = vmatprep.subr.mxu0 0.0
    %886 = vmatpush1.msra.mxu0 %v834
    %887 = vmatprep.subr.mxu0 0.0
    %888 = vmatpush1.msra.mxu0 %v835
    %889 = vmatprep.subr.mxu0 0.0
    %890 = vmatpush1.msra.mxu0 %v836
    %891 = vmatprep.subr.mxu0 0.0
    %892 = vmatpush1.msra.mxu0 %v837
    %893 = vmatprep.subr.mxu0 0.0
    %894 = vmatpush1.msra.mxu0 %v838
    %895 = vmatprep.subr.mxu0 0.0
    %896 = vmatpush1.msra.mxu0 %v839
    %897 = vmatprep.subr.mxu0 0.0
    %898 = vmatpush1.msra.mxu0 %v840
    %899 = vmatprep.subr.mxu0 0.0
    %900 = vmatpush1.msra.mxu0 %v841
    %901 = vmatprep.subr.mxu0 0.0
    %902 = vmatpush1.msra.mxu0 %v842
    %903 = vmatprep.subr.mxu0 0.0
    %904 = vmatpush1.msra.mxu0 %v843
    %905 = vmatprep.subr.mxu0 0.0
    %906 = vmatpush1.msra.mxu0 %v844
    %907 = vmatprep.subr.mxu0 0.0
    %908 = vmatpush1.msra.mxu0 %v845
    %909 = vmatprep.subr.mxu0 0.0
    %910 = vmatpush1.msra.mxu0 %v846
    %911 = vmatprep.subr.mxu0 0.0
    %912 = vmatpush1.msra.mxu0 %v847
    %913 = vmatprep.subr.mxu0 0.0
    %914 = vmatpush1.msra.mxu0 %v848
    %915 = vmatprep.subr.mxu0 0.0
    %916 = vmatpush1.msra.mxu0 %v849
    %917 = vmatprep.mubr.f32.mxu0 %v851
    %918 = vmatmul.mubr.f32.gmra.mrb[0].mxu0 %v816
    %v919 = vpop.f32.mrb[0].mxu0
    %v920 = vadd.f32 0.0, %v919
    %v921 = vpop.f32.mrb[0].mxu0
    %922 = vdwg.mxu0
    %923 = vst.msk [vmem:[#allocation2 + $0x7] sm:$0x1] %vm141, %v920
    %924 = vst.msk [vmem:[%s143 + $0x6] sm:$0x2] %vm144, %v920
    %925 = vst.msk [vmem:[%s146 + $0x5] sm:$0x4] %vm147, %v920
    %v926 = vld [vmem:[#allocation2] sm:$0xff]
    %v927 = vld [vmem:[%s2] sm:$0xff]
    %v928 = vld [vmem:[%s2 + $0x8] sm:$0xff]
    %v929 = vld [vmem:[%s2 + $0x10] sm:$0xff]
    %v930 = vld [vmem:[%s2 + $0x18] sm:$0xff]
    %v931 = vld [vmem:[%s2 + $0x20] sm:$0xff]
    %v932 = vld [vmem:[%s2 + $0x28] sm:$0xff]
    %v933 = vld [vmem:[%s2 + $0x30] sm:$0xff]
    %v934 = vld [vmem:[%s2 + $0x38] sm:$0xff]
    %v935 = vld [vmem:[%s143] sm:$0xff]
    %s936 = scalar_lea.vmem %s2, 64
    %v937 = vld [vmem:[%s936] sm:$0xff]
    %v938 = vld [vmem:[%s936 + $0x8] sm:$0xff]
    %v939 = vld [vmem:[%s936 + $0x10] sm:$0xff]
    %v940 = vld [vmem:[%s936 + $0x18] sm:$0xff]
    %v941 = vld [vmem:[%s936 + $0x20] sm:$0xff]
    %v942 = vld [vmem:[%s936 + $0x28] sm:$0xff]
    %v943 = vld [vmem:[%s936 + $0x30] sm:$0xff]
    %v944 = vld [vmem:[%s936 + $0x38] sm:$0xff]
    %vm945 = vcmask 523264
    %v947 = vsel %vm945, %v935, 0
    %949 = vmatprep.subr.mxu0 0.0
    %950 = vmatpush1.msra.mxu0 %v937
    %951 = vmatprep.subr.mxu0 0.0
    %952 = vmatpush1.msra.mxu0 %v938
    %953 = vmatprep.subr.mxu0 0.0
    %954 = vmatpush1.msra.mxu0 %v939
    %955 = vmatprep.subr.mxu0 0.0
    %956 = vmatpush1.msra.mxu0 %v940
    %957 = vmatprep.subr.mxu0 0.0
    %958 = vmatpush1.msra.mxu0 %v941
    %959 = vmatprep.subr.mxu0 0.0
    %960 = vmatpush1.msra.mxu0 %v942
    %961 = vmatprep.subr.mxu0 0.0
    %962 = vmatpush1.msra.mxu0 %v943
    %963 = vmatprep.subr.mxu0 0.0
    %964 = vmatpush1.msra.mxu0 %v944
    %965 = vmatprep.subr.mxu0 0.0
    %966 = vmatpush1.msra.mxu0 0.0
    %967 = vmatprep.subr.mxu0 0.0
    %968 = vmatpush1.msra.mxu0 0.0
    %969 = vmatprep.subr.mxu0 0.0
    %970 = vmatpush1.msra.mxu0 0.0
    %971 = vmatprep.subr.mxu0 0.0
    %972 = vmatpush1.msra.mxu0 0.0
    %973 = vmatprep.subr.mxu0 0.0
    %974 = vmatpush1.msra.mxu0 0.0
    %975 = vmatprep.subr.mxu0 0.0
    %976 = vmatpush1.msra.mxu0 0.0
    %977 = vmatprep.subr.mxu0 0.0
    %978 = vmatpush1.msra.mxu0 0.0
    %979 = vmatprep.subr.mxu0 0.0
    %980 = vmatpush1.msra.mxu0 0.0
    %981 = vmatprep.subr.mxu0 0.0
    %982 = vmatpush1.msra.mxu0 0.0
    %983 = vmatprep.subr.mxu0 0.0
    %984 = vmatpush1.msra.mxu0 0.0
    %985 = vmatprep.subr.mxu0 0.0
    %986 = vmatpush1.msra.mxu0 0.0
    %987 = vmatprep.subr.mxu0 0.0
    %988 = vmatpush1.msra.mxu0 0.0
    %989 = vmatprep.subr.mxu0 0.0
    %990 = vmatpush1.msra.mxu0 0.0
    %991 = vmatprep.subr.mxu0 0.0
    %992 = vmatpush1.msra.mxu0 0.0
    %993 = vmatprep.subr.mxu0 0.0
    %994 = vmatpush1.msra.mxu0 0.0
    %995 = vmatprep.subr.mxu0 0.0
    %996 = vmatpush1.msra.mxu0 0.0
    %997 = vmatprep.subr.mxu0 0.0
    %998 = vmatpush1.msra.mxu0 0.0
    %999 = vmatprep.subr.mxu0 0.0
    %1000 = vmatpush1.msra.mxu0 0.0
    %1001 = vmatprep.subr.mxu0 0.0
    %1002 = vmatpush1.msra.mxu0 0.0
    %1003 = vmatprep.subr.mxu0 0.0
    %1004 = vmatpush1.msra.mxu0 0.0
    %1005 = vmatprep.subr.mxu0 0.0
    %1006 = vmatpush1.msra.mxu0 0.0
    %1007 = vmatprep.subr.mxu0 0.0
    %1008 = vmatpush1.msra.mxu0 0.0
    %1009 = vmatprep.subr.mxu0 0.0
    %1010 = vmatpush1.msra.mxu0 0.0
    %1011 = vmatprep.subr.mxu0 0.0
    %1012 = vmatpush1.msra.mxu0 0.0
    %1013 = vmatprep.mubr.f32.mxu0 0.0
    %1014 = vmatmul.mubr.f32.gmra.mrb[0].mxu0 %v947
    %v1015 = vpop.f32.mrb[0].mxu0
    %v1016 = vadd.f32 0.0, %v1015
    %v1017 = vpop.f32.mrb[0].mxu0
    %1018 = vdwg.mxu0
    %v1020 = vsel %vm945, %v926, 0
    %1022 = vmatprep.subr.mxu0 0.0
    %1023 = vmatpush1.msra.mxu0 %v927
    %1024 = vmatprep.subr.mxu0 0.0
    %1025 = vmatpush1.msra.mxu0 %v928
    %1026 = vmatprep.subr.mxu0 0.0
    %1027 = vmatpush1.msra.mxu0 %v929
    %1028 = vmatprep.subr.mxu0 0.0
    %1029 = vmatpush1.msra.mxu0 %v930
    %1030 = vmatprep.subr.mxu0 0.0
    %1031 = vmatpush1.msra.mxu0 %v931
    %1032 = vmatprep.subr.mxu0 0.0
    %1033 = vmatpush1.msra.mxu0 %v932
    %1034 = vmatprep.subr.mxu0 0.0
    %1035 = vmatpush1.msra.mxu0 %v933
    %1036 = vmatprep.subr.mxu0 0.0
    %1037 = vmatpush1.msra.mxu0 %v934
    %1038 = vmatprep.subr.mxu0 0.0
    %1039 = vmatpush1.msra.mxu0 0.0
    %1040 = vmatprep.subr.mxu0 0.0
    %1041 = vmatpush1.msra.mxu0 0.0
    %1042 = vmatprep.subr.mxu0 0.0
    %1043 = vmatpush1.msra.mxu0 0.0
    %1044 = vmatprep.subr.mxu0 0.0
    %1045 = vmatpush1.msra.mxu0 0.0
    %1046 = vmatprep.subr.mxu0 0.0
    %1047 = vmatpush1.msra.mxu0 0.0
    %1048 = vmatprep.subr.mxu0 0.0
    %1049 = vmatpush1.msra.mxu0 0.0
    %1050 = vmatprep.subr.mxu0 0.0
    %1051 = vmatpush1.msra.mxu0 0.0
    %1052 = vmatprep.subr.mxu0 0.0
    %1053 = vmatpush1.msra.mxu0 0.0
    %1054 = vmatprep.subr.mxu0 0.0
    %1055 = vmatpush1.msra.mxu0 0.0
    %1056 = vmatprep.subr.mxu0 0.0
    %1057 = vmatpush1.msra.mxu0 0.0
    %1058 = vmatprep.subr.mxu0 0.0
    %1059 = vmatpush1.msra.mxu0 0.0
    %1060 = vmatprep.subr.mxu0 0.0
    %1061 = vmatpush1.msra.mxu0 0.0
    %1062 = vmatprep.subr.mxu0 0.0
    %1063 = vmatpush1.msra.mxu0 0.0
    %1064 = vmatprep.subr.mxu0 0.0
    %1065 = vmatpush1.msra.mxu0 0.0
    %1066 = vmatprep.subr.mxu0 0.0
    %1067 = vmatpush1.msra.mxu0 0.0
    %1068 = vmatprep.subr.mxu0 0.0
    %1069 = vmatpush1.msra.mxu0 0.0
    %1070 = vmatprep.subr.mxu0 0.0
    %1071 = vmatpush1.msra.mxu0 0.0
    %1072 = vmatprep.subr.mxu0 0.0
    %1073 = vmatpush1.msra.mxu0 0.0
    %1074 = vmatprep.subr.mxu0 0.0
    %1075 = vmatpush1.msra.mxu0 0.0
    %1076 = vmatprep.subr.mxu0 0.0
    %1077 = vmatpush1.msra.mxu0 0.0
    %1078 = vmatprep.subr.mxu0 0.0
    %1079 = vmatpush1.msra.mxu0 0.0
    %1080 = vmatprep.subr.mxu0 0.0
    %1081 = vmatpush1.msra.mxu0 0.0
    %1082 = vmatprep.subr.mxu0 0.0
    %1083 = vmatpush1.msra.mxu0 0.0
    %1084 = vmatprep.subr.mxu0 0.0
    %1085 = vmatpush1.msra.mxu0 0.0
    %1086 = vmatprep.mubr.f32.mxu0 0.0
    %1087 = vmatmul.mubr.f32.gmra.mrb[0].mxu0 %v1020
    %v1088 = vpop.f32.mrb[0].mxu0
    %v1089 = vadd.f32 %v1016, %v1088
    %v1090 = vpop.f32.mrb[0].mxu0
    %1091 = vdwg.mxu0
    %v1092 = vld [vmem:[%s146] sm:$0xff]
    %s1093 = scalar_lea.vmem %s2, 128
    %v1094 = vld [vmem:[%s1093] sm:$0xff]
    %v1095 = vld [vmem:[%s1093 + $0x8] sm:$0xff]
    %v1096 = vld [vmem:[%s1093 + $0x10] sm:$0xff]
    %v1097 = vld [vmem:[%s1093 + $0x18] sm:$0xff]
    %v1098 = vld [vmem:[%s1093 + $0x20] sm:$0xff]
    %v1099 = vld [vmem:[%s1093 + $0x28] sm:$0xff]
    %v1100 = vld [vmem:[%s1093 + $0x30] sm:$0xff]
    %v1101 = vld [vmem:[%s1093 + $0x38] sm:$0xff]
    %v1103 = vsel %vm945, %v1092, 0
    %1105 = vmatprep.subr.mxu0 0.0
    %1106 = vmatpush1.msra.mxu0 %v1094
    %1107 = vmatprep.subr.mxu0 0.0
    %1108 = vmatpush1.msra.mxu0 %v1095
    %1109 = vmatprep.subr.mxu0 0.0
    %1110 = vmatpush1.msra.mxu0 %v1096
    %1111 = vmatprep.subr.mxu0 0.0
    %1112 = vmatpush1.msra.mxu0 %v1097
    %1113 = vmatprep.subr.mxu0 0.0
    %1114 = vmatpush1.msra.mxu0 %v1098
    %1115 = vmatprep.subr.mxu0 0.0
    %1116 = vmatpush1.msra.mxu0 %v1099
    %1117 = vmatprep.subr.mxu0 0.0
    %1118 = vmatpush1.msra.mxu0 %v1100
    %1119 = vmatprep.subr.mxu0 0.0
    %1120 = vmatpush1.msra.mxu0 %v1101
    %1121 = vmatprep.subr.mxu0 0.0
    %1122 = vmatpush1.msra.mxu0 0.0
    %1123 = vmatprep.subr.mxu0 0.0
    %1124 = vmatpush1.msra.mxu0 0.0
    %1125 = vmatprep.subr.mxu0 0.0
    %1126 = vmatpush1.msra.mxu0 0.0
    %1127 = vmatprep.subr.mxu0 0.0
    %1128 = vmatpush1.msra.mxu0 0.0
    %1129 = vmatprep.subr.mxu0 0.0
    %1130 = vmatpush1.msra.mxu0 0.0
    %1131 = vmatprep.subr.mxu0 0.0
    %1132 = vmatpush1.msra.mxu0 0.0
    %1133 = vmatprep.subr.mxu0 0.0
    %1134 = vmatpush1.msra.mxu0 0.0
    %1135 = vmatprep.subr.mxu0 0.0
    %1136 = vmatpush1.msra.mxu0 0.0
    %1137 = vmatprep.subr.mxu0 0.0
    %1138 = vmatpush1.msra.mxu0 0.0
    %1139 = vmatprep.subr.mxu0 0.0
    %1140 = vmatpush1.msra.mxu0 0.0
    %1141 = vmatprep.subr.mxu0 0.0
    %1142 = vmatpush1.msra.mxu0 0.0
    %1143 = vmatprep.subr.mxu0 0.0
    %1144 = vmatpush1.msra.mxu0 0.0
    %1145 = vmatprep.subr.mxu0 0.0
    %1146 = vmatpush1.msra.mxu0 0.0
    %1147 = vmatprep.subr.mxu0 0.0
    %1148 = vmatpush1.msra.mxu0 0.0
    %1149 = vmatprep.subr.mxu0 0.0
    %1150 = vmatpush1.msra.mxu0 0.0
    %1151 = vmatprep.subr.mxu0 0.0
    %1152 = vmatpush1.msra.mxu0 0.0
    %1153 = vmatprep.subr.mxu0 0.0
    %1154 = vmatpush1.msra.mxu0 0.0
    %1155 = vmatprep.subr.mxu0 0.0
    %1156 = vmatpush1.msra.mxu0 0.0
    %1157 = vmatprep.subr.mxu0 0.0
    %1158 = vmatpush1.msra.mxu0 0.0
    %1159 = vmatprep.subr.mxu0 0.0
    %1160 = vmatpush1.msra.mxu0 0.0
    %1161 = vmatprep.subr.mxu0 0.0
    %1162 = vmatpush1.msra.mxu0 0.0
    %1163 = vmatprep.subr.mxu0 0.0
    %1164 = vmatpush1.msra.mxu0 0.0
    %1165 = vmatprep.subr.mxu0 0.0
    %1166 = vmatpush1.msra.mxu0 0.0
    %1167 = vmatprep.subr.mxu0 0.0
    %1168 = vmatpush1.msra.mxu0 0.0
    %1169 = vmatprep.mubr.f32.mxu0 0.0
    %1170 = vmatmul.mubr.f32.gmra.mrb[0].mxu0 %v1103
    %v1171 = vpop.f32.mrb[0].mxu0
    %v1172 = vadd.f32 0.0, %v1171
    %v1173 = vpop.f32.mrb[0].mxu0
    %1174 = vdwg.mxu0
    %v1175 = vadd.f32 %v1089, %v1172
    %v1176 = vld [vmem:[%s3] sm:$0x1]
    %v1178 = vlaneseq
    %v1179 = vshrl.u32 %v1178, 7
    %v1180 = vsub.s32 0, %v1179
    %v1181 = vrot.slane %v1176, %v1180
    %v1183 = vadd.f32 %v1175, %v1181
    %v1184 = vmax.f32 %v1183, 0.0
    %v1185 = vld [vmem:[%s4] sm:$0xff]
    %v1186 = vld [vmem:[%s4 + $0x8] sm:$0xff]
    %v1187 = vld [vmem:[%s4 + $0x10] sm:$0xff]
    %v1188 = vld [vmem:[%s4 + $0x18] sm:$0xff]
    %v1189 = vld [vmem:[%s4 + $0x20] sm:$0xff]
    %v1190 = vld [vmem:[%s4 + $0x28] sm:$0xff]
    %v1191 = vld [vmem:[%s4 + $0x30] sm:$0xff]
    %v1192 = vld [vmem:[%s4 + $0x38] sm:$0xff]
    %v1193 = vld [vmem:[%s4 + $0x40] sm:$0xff]
    %v1194 = vld [vmem:[%s4 + $0x48] sm:$0xff]
    %v1195 = vld [vmem:[%s4 + $0x50] sm:$0xff]
    %v1196 = vld [vmem:[%s4 + $0x58] sm:$0xff]
    %v1197 = vld [vmem:[%s4 + $0x60] sm:$0xff]
    %v1198 = vld [vmem:[%s4 + $0x68] sm:$0xff]
    %v1199 = vld [vmem:[%s4 + $0x70] sm:$0xff]
    %v1200 = vld [vmem:[%s4 + $0x78] sm:$0xff]
    %v1201 = vld [vmem:[%s4 + $0x80] sm:$0xff]
    %v1202 = vld [vmem:[%s4 + $0x88] sm:$0xff]
    %v1203 = vld [vmem:[%s4 + $0x90] sm:$0xff]
    %v1204 = vld [vmem:[%s4 + $0x98] sm:$0xff]
    %v1205 = vld [vmem:[%s4 + $0xa0] sm:$0xff]
    %v1206 = vld [vmem:[%s4 + $0xa8] sm:$0xff]
    %v1207 = vld [vmem:[%s4 + $0xb0] sm:$0xff]
    %v1208 = vld [vmem:[%s4 + $0xb8] sm:$0xff]
    %v1209 = vld [vmem:[%s4 + $0xc0] sm:$0xff]
    %v1210 = vld [vmem:[%s4 + $0xc8] sm:$0xff]
    %v1211 = vld [vmem:[%s4 + $0xd0] sm:$0xff]
    %v1212 = vld [vmem:[%s4 + $0xd8] sm:$0xff]
    %v1213 = vld [vmem:[%s4 + $0xe0] sm:$0xff]
    %v1214 = vld [vmem:[%s4 + $0xe8] sm:$0xff]
    %v1215 = vld [vmem:[%s4 + $0xf0] sm:$0xff]
    %v1216 = vld [vmem:[%s4 + $0xf8] sm:$0xff]
    %v1217 = vld [vmem:[%s4 + $0x100] sm:$0xff]
    %v1218 = vld [vmem:[%s4 + $0x108] sm:$0xff]
    %v1219 = vld [vmem:[%s4 + $0x110] sm:$0xff]
    %v1220 = vld [vmem:[%s4 + $0x118] sm:$0xff]
    %v1221 = vld [vmem:[%s4 + $0x120] sm:$0xff]
    %v1222 = vld [vmem:[%s4 + $0x128] sm:$0xff]
    %v1223 = vld [vmem:[%s4 + $0x130] sm:$0xff]
    %v1224 = vld [vmem:[%s4 + $0x138] sm:$0xff]
    %v1225 = vld [vmem:[%s4 + $0x140] sm:$0xff]
    %v1226 = vld [vmem:[%s4 + $0x148] sm:$0xff]
    %v1227 = vld [vmem:[%s4 + $0x150] sm:$0xff]
    %v1228 = vld [vmem:[%s4 + $0x158] sm:$0xff]
    %v1229 = vld [vmem:[%s4 + $0x160] sm:$0xff]
    %v1230 = vld [vmem:[%s4 + $0x168] sm:$0xff]
    %v1231 = vld [vmem:[%s4 + $0x170] sm:$0xff]
    %v1232 = vld [vmem:[%s4 + $0x178] sm:$0xff]
    %v1233 = vld [vmem:[%s4 + $0x180] sm:$0xff]
    %v1234 = vld [vmem:[%s4 + $0x188] sm:$0xff]
    %v1235 = vld [vmem:[%s4 + $0x190] sm:$0xff]
    %v1236 = vld [vmem:[%s4 + $0x198] sm:$0xff]
    %v1237 = vld [vmem:[%s4 + $0x1a0] sm:$0xff]
    %v1238 = vld [vmem:[%s4 + $0x1a8] sm:$0xff]
    %v1239 = vld [vmem:[%s4 + $0x1b0] sm:$0xff]
    %v1240 = vld [vmem:[%s4 + $0x1b8] sm:$0xff]
    %v1241 = vld [vmem:[%s4 + $0x1c0] sm:$0xff]
    %v1242 = vld [vmem:[%s4 + $0x1c8] sm:$0xff]
    %v1243 = vld [vmem:[%s4 + $0x1d0] sm:$0xff]
    %v1244 = vld [vmem:[%s4 + $0x1d8] sm:$0xff]
    %v1245 = vld [vmem:[%s4 + $0x1e0] sm:$0xff]
    %v1246 = vld [vmem:[%s4 + $0x1e8] sm:$0xff]
    %v1247 = vld [vmem:[%s4 + $0x1f0] sm:$0xff]
    %v1248 = vld [vmem:[%s4 + $0x1f8] sm:$0xff]
    %v1249 = vld [vmem:[%s4 + $0x200] sm:$0xff]
    %v1250 = vld [vmem:[%s4 + $0x208] sm:$0xff]
    %v1251 = vld [vmem:[%s4 + $0x210] sm:$0xff]
    %v1252 = vld [vmem:[%s4 + $0x218] sm:$0xff]
    %v1253 = vld [vmem:[%s4 + $0x220] sm:$0xff]
    %v1254 = vld [vmem:[%s4 + $0x228] sm:$0xff]
    %v1255 = vld [vmem:[%s4 + $0x230] sm:$0xff]
    %v1256 = vld [vmem:[%s4 + $0x238] sm:$0xff]
    %v1257 = vld [vmem:[%s4 + $0x240] sm:$0xff]
    %v1258 = vld [vmem:[%s4 + $0x248] sm:$0xff]
    %v1259 = vld [vmem:[%s4 + $0x250] sm:$0xff]
    %v1260 = vld [vmem:[%s4 + $0x258] sm:$0xff]
    %v1261 = vld [vmem:[%s4 + $0x260] sm:$0xff]
    %v1262 = vld [vmem:[%s4 + $0x268] sm:$0xff]
    %v1263 = vld [vmem:[%s4 + $0x270] sm:$0xff]
    %v1264 = vld [vmem:[%s4 + $0x278] sm:$0xff]
    %v1265 = vld [vmem:[%s4 + $0x280] sm:$0xff]
    %v1266 = vld [vmem:[%s4 + $0x288] sm:$0xff]
    %v1267 = vld [vmem:[%s4 + $0x290] sm:$0xff]
    %v1268 = vld [vmem:[%s4 + $0x298] sm:$0xff]
    %v1269 = vld [vmem:[%s4 + $0x2a0] sm:$0xff]
    %v1270 = vld [vmem:[%s4 + $0x2a8] sm:$0xff]
    %v1271 = vld [vmem:[%s4 + $0x2b0] sm:$0xff]
    %v1272 = vld [vmem:[%s4 + $0x2b8] sm:$0xff]
    %v1273 = vld [vmem:[%s4 + $0x2c0] sm:$0xff]
    %v1274 = vld [vmem:[%s4 + $0x2c8] sm:$0xff]
    %v1275 = vld [vmem:[%s4 + $0x2d0] sm:$0xff]
    %v1276 = vld [vmem:[%s4 + $0x2d8] sm:$0xff]
    %v1277 = vld [vmem:[%s4 + $0x2e0] sm:$0xff]
    %v1278 = vld [vmem:[%s4 + $0x2e8] sm:$0xff]
    %v1279 = vld [vmem:[%s4 + $0x2f0] sm:$0xff]
    %v1280 = vld [vmem:[%s4 + $0x2f8] sm:$0xff]
    %v1281 = vld [vmem:[%s4 + $0x300] sm:$0xff]
    %v1282 = vld [vmem:[%s4 + $0x308] sm:$0xff]
    %v1283 = vld [vmem:[%s4 + $0x310] sm:$0xff]
    %v1284 = vld [vmem:[%s4 + $0x318] sm:$0xff]
    %v1285 = vld [vmem:[%s4 + $0x320] sm:$0xff]
    %v1286 = vld [vmem:[%s4 + $0x328] sm:$0xff]
    %v1287 = vld [vmem:[%s4 + $0x330] sm:$0xff]
    %v1288 = vld [vmem:[%s4 + $0x338] sm:$0xff]
    %v1289 = vld [vmem:[%s4 + $0x340] sm:$0xff]
    %v1290 = vld [vmem:[%s4 + $0x348] sm:$0xff]
    %v1291 = vld [vmem:[%s4 + $0x350] sm:$0xff]
    %v1292 = vld [vmem:[%s4 + $0x358] sm:$0xff]
    %v1293 = vld [vmem:[%s4 + $0x360] sm:$0xff]
    %v1294 = vld [vmem:[%s4 + $0x368] sm:$0xff]
    %v1295 = vld [vmem:[%s4 + $0x370] sm:$0xff]
    %v1296 = vld [vmem:[%s4 + $0x378] sm:$0xff]
    %v1297 = vld [vmem:[%s4 + $0x380] sm:$0xff]
    %v1298 = vld [vmem:[%s4 + $0x388] sm:$0xff]
    %v1299 = vld [vmem:[%s4 + $0x390] sm:$0xff]
    %v1300 = vld [vmem:[%s4 + $0x398] sm:$0xff]
    %v1301 = vld [vmem:[%s4 + $0x3a0] sm:$0xff]
    %v1302 = vld [vmem:[%s4 + $0x3a8] sm:$0xff]
    %v1303 = vld [vmem:[%s4 + $0x3b0] sm:$0xff]
    %v1304 = vld [vmem:[%s4 + $0x3b8] sm:$0xff]
    %v1305 = vld [vmem:[%s4 + $0x3c0] sm:$0xff]
    %v1306 = vld [vmem:[%s4 + $0x3c8] sm:$0xff]
    %v1307 = vld [vmem:[%s4 + $0x3d0] sm:$0xff]
    %v1308 = vld [vmem:[%s4 + $0x3d8] sm:$0xff]
    %v1309 = vld [vmem:[%s4 + $0x3e0] sm:$0xff]
    %v1310 = vld [vmem:[%s4 + $0x3e8] sm:$0xff]
    %v1311 = vld [vmem:[%s4 + $0x3f0] sm:$0xff]
    %v1312 = vld [vmem:[%s4 + $0x3f8] sm:$0xff]
    %v1313 = vld [vmem:[%s5] sm:$0xff]
    %v1315 = vlaneseq
    %v1316 = vshrl.u32 %v1315, 7
    %v1317 = vsub.s32 0, %v1316
    %v1318 = vrot.slane %v1313, %v1317
    %v1319 = vlaneseq
    %v1320 = vshrl.u32 %v1319, 7
    %v1321 = vsub.s32 1, %v1320
    %v1322 = vrot.slane %v1313, %v1321
    %v1323 = vlaneseq
    %v1324 = vshrl.u32 %v1323, 7
    %v1325 = vsub.s32 2, %v1324
    %v1326 = vrot.slane %v1313, %v1325
    %v1327 = vlaneseq
    %v1328 = vshrl.u32 %v1327, 7
    %v1329 = vsub.s32 3, %v1328
    %v1330 = vrot.slane %v1313, %v1329
    %v1331 = vlaneseq
    %v1332 = vshrl.u32 %v1331, 7
    %v1333 = vsub.s32 4, %v1332
    %v1334 = vrot.slane %v1313, %v1333
    %v1335 = vlaneseq
    %v1336 = vshrl.u32 %v1335, 7
    %v1337 = vsub.s32 5, %v1336
    %v1338 = vrot.slane %v1313, %v1337
    %v1339 = vlaneseq
    %v1340 = vshrl.u32 %v1339, 7
    %v1341 = vsub.s32 6, %v1340
    %v1342 = vrot.slane %v1313, %v1341
    %v1343 = vlaneseq
    %v1344 = vshrl.u32 %v1343, 7
    %v1345 = vsub.s32 7, %v1344
    %v1346 = vrot.slane %v1313, %v1345
    %1355 = vmatprep.subr.mxu0 %v1186
    %1356 = vmatpush1.msra.mxu0 %v1185
    %1357 = vmatprep.subr.mxu0 %v1194
    %1358 = vmatpush1.msra.mxu0 %v1193
    %1359 = vmatprep.subr.mxu0 %v1202
    %1360 = vmatpush1.msra.mxu0 %v1201
    %1361 = vmatprep.subr.mxu0 %v1210
    %1362 = vmatpush1.msra.mxu0 %v1209
    %1363 = vmatprep.subr.mxu0 %v1218
    %1364 = vmatpush1.msra.mxu0 %v1217
    %1365 = vmatprep.subr.mxu0 %v1226
    %1366 = vmatpush1.msra.mxu0 %v1225
    %1367 = vmatprep.subr.mxu0 %v1234
    %1368 = vmatpush1.msra.mxu0 %v1233
    %1369 = vmatprep.subr.mxu0 %v1242
    %1370 = vmatpush1.msra.mxu0 %v1241
    %1371 = vmatprep.subr.mxu0 %v1250
    %1372 = vmatpush1.msra.mxu0 %v1249
    %1373 = vmatprep.subr.mxu0 %v1258
    %1374 = vmatpush1.msra.mxu0 %v1257
    %1375 = vmatprep.subr.mxu0 %v1266
    %1376 = vmatpush1.msra.mxu0 %v1265
    %1377 = vmatprep.subr.mxu0 %v1274
    %1378 = vmatpush1.msra.mxu0 %v1273
    %1379 = vmatprep.subr.mxu0 %v1282
    %1380 = vmatpush1.msra.mxu0 %v1281
    %1381 = vmatprep.subr.mxu0 %v1290
    %1382 = vmatpush1.msra.mxu0 %v1289
    %1383 = vmatprep.subr.mxu0 %v1298
    %1384 = vmatpush1.msra.mxu0 %v1297
    %1385 = vmatprep.subr.mxu0 %v1306
    %1386 = vmatpush1.msra.mxu0 %v1305
    %1387 = vmatprep.subr.mxu0 0.0
    %1388 = vmatpush1.msra.mxu0 0.0
    %1389 = vmatprep.subr.mxu0 0.0
    %1390 = vmatpush1.msra.mxu0 0.0
    %1391 = vmatprep.subr.mxu0 0.0
    %1392 = vmatpush1.msra.mxu0 0.0
    %1393 = vmatprep.subr.mxu0 0.0
    %1394 = vmatpush1.msra.mxu0 0.0
    %1395 = vmatprep.subr.mxu0 0.0
    %1396 = vmatpush1.msra.mxu0 0.0
    %1397 = vmatprep.subr.mxu0 0.0
    %1398 = vmatpush1.msra.mxu0 0.0
    %1399 = vmatprep.subr.mxu0 0.0
    %1400 = vmatpush1.msra.mxu0 0.0
    %1401 = vmatprep.subr.mxu0 0.0
    %1402 = vmatpush1.msra.mxu0 0.0
    %1403 = vmatprep.subr.mxu0 0.0
    %1404 = vmatpush1.msra.mxu0 0.0
    %1405 = vmatprep.subr.mxu0 0.0
    %1406 = vmatpush1.msra.mxu0 0.0
    %1407 = vmatprep.subr.mxu0 0.0
    %1408 = vmatpush1.msra.mxu0 0.0
    %1409 = vmatprep.subr.mxu0 0.0
    %1410 = vmatpush1.msra.mxu0 0.0
    %1411 = vmatprep.subr.mxu0 0.0
    %1412 = vmatpush1.msra.mxu0 0.0
    %1413 = vmatprep.subr.mxu0 0.0
    %1414 = vmatpush1.msra.mxu0 0.0
    %1415 = vmatprep.subr.mxu0 0.0
    %1416 = vmatpush1.msra.mxu0 0.0
    %1417 = vmatprep.subr.mxu0 0.0
    %1418 = vmatpush1.msra.mxu0 0.0
    %1419 = vmatprep.mubr.f32.mxu0 0.0
    %1420 = vmatmul.mubr.f32.gmra.mrb[0].mxu0 %v1184
    %v1421 = vpop.f32.mrb[0].mxu0
    %v1422 = vadd.f32 %v1318, %v1421
    %v1423 = vpop.f32.mrb[0].mxu0
    %v1424 = vadd.f32 %v1322, %v1423
    %1425 = vdwg.mxu0
    %1426 = vmatprep.subr.mxu0 %v1188
    %1427 = vmatpush1.msra.mxu0 %v1187
    %1428 = vmatprep.subr.mxu0 %v1196
    %1429 = vmatpush1.msra.mxu0 %v1195
    %1430 = vmatprep.subr.mxu0 %v1204
    %1431 = vmatpush1.msra.mxu0 %v1203
    %1432 = vmatprep.subr.mxu0 %v1212
    %1433 = vmatpush1.msra.mxu0 %v1211
    %1434 = vmatprep.subr.mxu0 %v1220
    %1435 = vmatpush1.msra.mxu0 %v1219
    %1436 = vmatprep.subr.mxu0 %v1228
    %1437 = vmatpush1.msra.mxu0 %v1227
    %1438 = vmatprep.subr.mxu0 %v1236
    %1439 = vmatpush1.msra.mxu0 %v1235
    %1440 = vmatprep.subr.mxu0 %v1244
    %1441 = vmatpush1.msra.mxu0 %v1243
    %1442 = vmatprep.subr.mxu0 %v1252
    %1443 = vmatpush1.msra.mxu0 %v1251
    %1444 = vmatprep.subr.mxu0 %v1260
    %1445 = vmatpush1.msra.mxu0 %v1259
    %1446 = vmatprep.subr.mxu0 %v1268
    %1447 = vmatpush1.msra.mxu0 %v1267
    %1448 = vmatprep.subr.mxu0 %v1276
    %1449 = vmatpush1.msra.mxu0 %v1275
    %1450 = vmatprep.subr.mxu0 %v1284
    %1451 = vmatpush1.msra.mxu0 %v1283
    %1452 = vmatprep.subr.mxu0 %v1292
    %1453 = vmatpush1.msra.mxu0 %v1291
    %1454 = vmatprep.subr.mxu0 %v1300
    %1455 = vmatpush1.msra.mxu0 %v1299
    %1456 = vmatprep.subr.mxu0 %v1308
    %1457 = vmatpush1.msra.mxu0 %v1307
    %1458 = vmatprep.subr.mxu0 0.0
    %1459 = vmatpush1.msra.mxu0 0.0
    %1460 = vmatprep.subr.mxu0 0.0
    %1461 = vmatpush1.msra.mxu0 0.0
    %1462 = vmatprep.subr.mxu0 0.0
    %1463 = vmatpush1.msra.mxu0 0.0
    %1464 = vmatprep.subr.mxu0 0.0
    %1465 = vmatpush1.msra.mxu0 0.0
    %1466 = vmatprep.subr.mxu0 0.0
    %1467 = vmatpush1.msra.mxu0 0.0
    %1468 = vmatprep.subr.mxu0 0.0
    %1469 = vmatpush1.msra.mxu0 0.0
    %1470 = vmatprep.subr.mxu0 0.0
    %1471 = vmatpush1.msra.mxu0 0.0
    %1472 = vmatprep.subr.mxu0 0.0
    %1473 = vmatpush1.msra.mxu0 0.0
    %1474 = vmatprep.subr.mxu0 0.0
    %1475 = vmatpush1.msra.mxu0 0.0
    %1476 = vmatprep.subr.mxu0 0.0
    %1477 = vmatpush1.msra.mxu0 0.0
    %1478 = vmatprep.subr.mxu0 0.0
    %1479 = vmatpush1.msra.mxu0 0.0
    %1480 = vmatprep.subr.mxu0 0.0
    %1481 = vmatpush1.msra.mxu0 0.0
    %1482 = vmatprep.subr.mxu0 0.0
    %1483 = vmatpush1.msra.mxu0 0.0
    %1484 = vmatprep.subr.mxu0 0.0
    %1485 = vmatpush1.msra.mxu0 0.0
    %1486 = vmatprep.subr.mxu0 0.0
    %1487 = vmatpush1.msra.mxu0 0.0
    %1488 = vmatprep.subr.mxu0 0.0
    %1489 = vmatpush1.msra.mxu0 0.0
    %1490 = vmatprep.mubr.f32.mxu0 0.0
    %1491 = vmatmul.mubr.f32.gmra.mrb[0].mxu0 %v1184
    %v1492 = vpop.f32.mrb[0].mxu0
    %v1493 = vadd.f32 %v1326, %v1492
    %v1494 = vpop.f32.mrb[0].mxu0
    %v1495 = vadd.f32 %v1330, %v1494
    %1496 = vdwg.mxu0
    %1497 = vmatprep.subr.mxu0 %v1190
    %1498 = vmatpush1.msra.mxu0 %v1189
    %1499 = vmatprep.subr.mxu0 %v1198
    %1500 = vmatpush1.msra.mxu0 %v1197
    %1501 = vmatprep.subr.mxu0 %v1206
    %1502 = vmatpush1.msra.mxu0 %v1205
    %1503 = vmatprep.subr.mxu0 %v1214
    %1504 = vmatpush1.msra.mxu0 %v1213
    %1505 = vmatprep.subr.mxu0 %v1222
    %1506 = vmatpush1.msra.mxu0 %v1221
    %1507 = vmatprep.subr.mxu0 %v1230
    %1508 = vmatpush1.msra.mxu0 %v1229
    %1509 = vmatprep.subr.mxu0 %v1238
    %1510 = vmatpush1.msra.mxu0 %v1237
    %1511 = vmatprep.subr.mxu0 %v1246
    %1512 = vmatpush1.msra.mxu0 %v1245
    %1513 = vmatprep.subr.mxu0 %v1254
    %1514 = vmatpush1.msra.mxu0 %v1253
    %1515 = vmatprep.subr.mxu0 %v1262
    %1516 = vmatpush1.msra.mxu0 %v1261
    %1517 = vmatprep.subr.mxu0 %v1270
    %1518 = vmatpush1.msra.mxu0 %v1269
    %1519 = vmatprep.subr.mxu0 %v1278
    %1520 = vmatpush1.msra.mxu0 %v1277
    %1521 = vmatprep.subr.mxu0 %v1286
    %1522 = vmatpush1.msra.mxu0 %v1285
    %1523 = vmatprep.subr.mxu0 %v1294
    %1524 = vmatpush1.msra.mxu0 %v1293
    %1525 = vmatprep.subr.mxu0 %v1302
    %1526 = vmatpush1.msra.mxu0 %v1301
    %1527 = vmatprep.subr.mxu0 %v1310
    %1528 = vmatpush1.msra.mxu0 %v1309
    %1529 = vmatprep.subr.mxu0 0.0
    %1530 = vmatpush1.msra.mxu0 0.0
    %1531 = vmatprep.subr.mxu0 0.0
    %1532 = vmatpush1.msra.mxu0 0.0
    %1533 = vmatprep.subr.mxu0 0.0
    %1534 = vmatpush1.msra.mxu0 0.0
    %1535 = vmatprep.subr.mxu0 0.0
    %1536 = vmatpush1.msra.mxu0 0.0
    %1537 = vmatprep.subr.mxu0 0.0
    %1538 = vmatpush1.msra.mxu0 0.0
    %1539 = vmatprep.subr.mxu0 0.0
    %1540 = vmatpush1.msra.mxu0 0.0
    %1541 = vmatprep.subr.mxu0 0.0
    %1542 = vmatpush1.msra.mxu0 0.0
    %1543 = vmatprep.subr.mxu0 0.0
    %1544 = vmatpush1.msra.mxu0 0.0
    %1545 = vmatprep.subr.mxu0 0.0
    %1546 = vmatpush1.msra.mxu0 0.0
    %1547 = vmatprep.subr.mxu0 0.0
    %1548 = vmatpush1.msra.mxu0 0.0
    %1549 = vmatprep.subr.mxu0 0.0
    %1550 = vmatpush1.msra.mxu0 0.0
    %1551 = vmatprep.subr.mxu0 0.0
    %1552 = vmatpush1.msra.mxu0 0.0
    %1553 = vmatprep.subr.mxu0 0.0
    %1554 = vmatpush1.msra.mxu0 0.0
    %1555 = vmatprep.subr.mxu0 0.0
    %1556 = vmatpush1.msra.mxu0 0.0
    %1557 = vmatprep.subr.mxu0 0.0
    %1558 = vmatpush1.msra.mxu0 0.0
    %1559 = vmatprep.subr.mxu0 0.0
    %1560 = vmatpush1.msra.mxu0 0.0
    %1561 = vmatprep.mubr.f32.mxu0 0.0
    %1562 = vmatmul.mubr.f32.gmra.mrb[0].mxu0 %v1184
    %v1563 = vpop.f32.mrb[0].mxu0
    %v1564 = vadd.f32 %v1334, %v1563
    %v1565 = vpop.f32.mrb[0].mxu0
    %v1566 = vadd.f32 %v1338, %v1565
    %1567 = vdwg.mxu0
    %1568 = vmatprep.subr.mxu0 %v1192
    %1569 = vmatpush1.msra.mxu0 %v1191
    %1570 = vmatprep.subr.mxu0 %v1200
    %1571 = vmatpush1.msra.mxu0 %v1199
    %1572 = vmatprep.subr.mxu0 %v1208
    %1573 = vmatpush1.msra.mxu0 %v1207
    %1574 = vmatprep.subr.mxu0 %v1216
    %1575 = vmatpush1.msra.mxu0 %v1215
    %1576 = vmatprep.subr.mxu0 %v1224
    %1577 = vmatpush1.msra.mxu0 %v1223
    %1578 = vmatprep.subr.mxu0 %v1232
    %1579 = vmatpush1.msra.mxu0 %v1231
    %1580 = vmatprep.subr.mxu0 %v1240
    %1581 = vmatpush1.msra.mxu0 %v1239
    %1582 = vmatprep.subr.mxu0 %v1248
    %1583 = vmatpush1.msra.mxu0 %v1247
    %1584 = vmatprep.subr.mxu0 %v1256
    %1585 = vmatpush1.msra.mxu0 %v1255
    %1586 = vmatprep.subr.mxu0 %v1264
    %1587 = vmatpush1.msra.mxu0 %v1263
    %1588 = vmatprep.subr.mxu0 %v1272
    %1589 = vmatpush1.msra.mxu0 %v1271
    %1590 = vmatprep.subr.mxu0 %v1280
    %1591 = vmatpush1.msra.mxu0 %v1279
    %1592 = vmatprep.subr.mxu0 %v1288
    %1593 = vmatpush1.msra.mxu0 %v1287
    %1594 = vmatprep.subr.mxu0 %v1296
    %1595 = vmatpush1.msra.mxu0 %v1295
    %1596 = vmatprep.subr.mxu0 %v1304
    %1597 = vmatpush1.msra.mxu0 %v1303
    %1598 = vmatprep.subr.mxu0 %v1312
    %1599 = vmatpush1.msra.mxu0 %v1311
    %1600 = vmatprep.subr.mxu0 0.0
    %1601 = vmatpush1.msra.mxu0 0.0
    %1602 = vmatprep.subr.mxu0 0.0
    %1603 = vmatpush1.msra.mxu0 0.0
    %1604 = vmatprep.subr.mxu0 0.0
    %1605 = vmatpush1.msra.mxu0 0.0
    %1606 = vmatprep.subr.mxu0 0.0
    %1607 = vmatpush1.msra.mxu0 0.0
    %1608 = vmatprep.subr.mxu0 0.0
    %1609 = vmatpush1.msra.mxu0 0.0
    %1610 = vmatprep.subr.mxu0 0.0
    %1611 = vmatpush1.msra.mxu0 0.0
    %1612 = vmatprep.subr.mxu0 0.0
    %1613 = vmatpush1.msra.mxu0 0.0
    %1614 = vmatprep.subr.mxu0 0.0
    %1615 = vmatpush1.msra.mxu0 0.0
    %1616 = vmatprep.subr.mxu0 0.0
    %1617 = vmatpush1.msra.mxu0 0.0
    %1618 = vmatprep.subr.mxu0 0.0
    %1619 = vmatpush1.msra.mxu0 0.0
    %1620 = vmatprep.subr.mxu0 0.0
    %1621 = vmatpush1.msra.mxu0 0.0
    %1622 = vmatprep.subr.mxu0 0.0
    %1623 = vmatpush1.msra.mxu0 0.0
    %1624 = vmatprep.subr.mxu0 0.0
    %1625 = vmatpush1.msra.mxu0 0.0
    %1626 = vmatprep.subr.mxu0 0.0
    %1627 = vmatpush1.msra.mxu0 0.0
    %1628 = vmatprep.subr.mxu0 0.0
    %1629 = vmatpush1.msra.mxu0 0.0
    %1630 = vmatprep.subr.mxu0 0.0
    %1631 = vmatpush1.msra.mxu0 0.0
    %1632 = vmatprep.mubr.f32.mxu0 0.0
    %1633 = vmatmul.mubr.f32.gmra.mrb[0].mxu0 %v1184
    %v1634 = vpop.f32.mrb[0].mxu0
    %v1635 = vadd.f32 %v1342, %v1634
    %v1636 = vpop.f32.mrb[0].mxu0
    %v1637 = vadd.f32 %v1346, %v1636
    %1638 = vdwg.mxu0
    %v1639 = vld [vmem:[%s6] sm:$0xff]
    %v1640 = vld [vmem:[%s6 + $0x8] sm:$0xff]
    %v1641 = vld [vmem:[%s6 + $0x10] sm:$0xff]
    %v1642 = vld [vmem:[%s6 + $0x18] sm:$0xff]
    %v1643 = vld [vmem:[%s6 + $0x20] sm:$0xff]
    %v1644 = vld [vmem:[%s6 + $0x28] sm:$0xff]
    %v1645 = vld [vmem:[%s6 + $0x30] sm:$0xff]
    %v1646 = vld [vmem:[%s6 + $0x38] sm:$0xff]
    %v1647 = vld [vmem:[%s6 + $0x40] sm:$0xff]
    %v1648 = vld [vmem:[%s6 + $0x48] sm:$0xff]
    %v1649 = vld [vmem:[%s6 + $0x50] sm:$0xff]
    %v1650 = vld [vmem:[%s6 + $0x58] sm:$0xff]
    %v1651 = vld [vmem:[%s6 + $0x60] sm:$0xff]
    %v1652 = vld [vmem:[%s6 + $0x68] sm:$0xff]
    %v1653 = vld [vmem:[%s6 + $0x70] sm:$0xff]
    %v1654 = vld [vmem:[%s6 + $0x78] sm:$0xff]
    %v1655 = vld [vmem:[%s6 + $0x80] sm:$0xff]
    %v1656 = vld [vmem:[%s6 + $0x88] sm:$0xff]
    %v1657 = vld [vmem:[%s6 + $0x90] sm:$0xff]
    %v1658 = vld [vmem:[%s6 + $0x98] sm:$0xff]
    %v1659 = vld [vmem:[%s6 + $0xa0] sm:$0xff]
    %v1660 = vld [vmem:[%s6 + $0xa8] sm:$0xff]
    %v1661 = vld [vmem:[%s6 + $0xb0] sm:$0xff]
    %v1662 = vld [vmem:[%s6 + $0xb8] sm:$0xff]
    %v1663 = vld [vmem:[%s6 + $0xc0] sm:$0xff]
    %v1664 = vld [vmem:[%s6 + $0xc8] sm:$0xff]
    %v1665 = vld [vmem:[%s6 + $0xd0] sm:$0xff]
    %v1666 = vld [vmem:[%s6 + $0xd8] sm:$0xff]
    %v1667 = vld [vmem:[%s6 + $0xe0] sm:$0xff]
    %v1668 = vld [vmem:[%s6 + $0xe8] sm:$0xff]
    %v1669 = vld [vmem:[%s6 + $0xf0] sm:$0xff]
    %v1670 = vld [vmem:[%s6 + $0xf8] sm:$0xff]
    %v1671 = vld [vmem:[%s6 + $0x100] sm:$0xff]
    %v1672 = vld [vmem:[%s6 + $0x108] sm:$0xff]
    %v1673 = vld [vmem:[%s6 + $0x110] sm:$0xff]
    %v1674 = vld [vmem:[%s6 + $0x118] sm:$0xff]
    %v1675 = vld [vmem:[%s6 + $0x120] sm:$0xff]
    %v1676 = vld [vmem:[%s6 + $0x128] sm:$0xff]
    %v1677 = vld [vmem:[%s6 + $0x130] sm:$0xff]
    %v1678 = vld [vmem:[%s6 + $0x138] sm:$0xff]
    %v1679 = vld [vmem:[%s6 + $0x140] sm:$0xff]
    %v1680 = vld [vmem:[%s6 + $0x148] sm:$0xff]
    %v1681 = vld [vmem:[%s6 + $0x150] sm:$0xff]
    %v1682 = vld [vmem:[%s6 + $0x158] sm:$0xff]
    %v1683 = vld [vmem:[%s6 + $0x160] sm:$0xff]
    %v1684 = vld [vmem:[%s6 + $0x168] sm:$0xff]
    %v1685 = vld [vmem:[%s6 + $0x170] sm:$0xff]
    %v1686 = vld [vmem:[%s6 + $0x178] sm:$0xff]
    %v1687 = vld [vmem:[%s6 + $0x180] sm:$0xff]
    %v1688 = vld [vmem:[%s6 + $0x188] sm:$0xff]
    %v1689 = vld [vmem:[%s6 + $0x190] sm:$0xff]
    %v1690 = vld [vmem:[%s6 + $0x198] sm:$0xff]
    %v1691 = vld [vmem:[%s6 + $0x1a0] sm:$0xff]
    %v1692 = vld [vmem:[%s6 + $0x1a8] sm:$0xff]
    %v1693 = vld [vmem:[%s6 + $0x1b0] sm:$0xff]
    %v1694 = vld [vmem:[%s6 + $0x1b8] sm:$0xff]
    %v1695 = vld [vmem:[%s6 + $0x1c0] sm:$0xff]
    %v1696 = vld [vmem:[%s6 + $0x1c8] sm:$0xff]
    %v1697 = vld [vmem:[%s6 + $0x1d0] sm:$0xff]
    %v1698 = vld [vmem:[%s6 + $0x1d8] sm:$0xff]
    %v1699 = vld [vmem:[%s6 + $0x1e0] sm:$0xff]
    %v1700 = vld [vmem:[%s6 + $0x1e8] sm:$0xff]
    %v1701 = vld [vmem:[%s6 + $0x1f0] sm:$0xff]
    %v1702 = vld [vmem:[%s6 + $0x1f8] sm:$0xff]
    %v1703 = vld [vmem:[%s6 + $0x200] sm:$0xff]
    %v1704 = vld [vmem:[%s6 + $0x208] sm:$0xff]
    %v1705 = vld [vmem:[%s6 + $0x210] sm:$0xff]
    %v1706 = vld [vmem:[%s6 + $0x218] sm:$0xff]
    %v1707 = vld [vmem:[%s6 + $0x220] sm:$0xff]
    %v1708 = vld [vmem:[%s6 + $0x228] sm:$0xff]
    %v1709 = vld [vmem:[%s6 + $0x230] sm:$0xff]
    %v1710 = vld [vmem:[%s6 + $0x238] sm:$0xff]
    %v1711 = vld [vmem:[%s6 + $0x240] sm:$0xff]
    %v1712 = vld [vmem:[%s6 + $0x248] sm:$0xff]
    %v1713 = vld [vmem:[%s6 + $0x250] sm:$0xff]
    %v1714 = vld [vmem:[%s6 + $0x258] sm:$0xff]
    %v1715 = vld [vmem:[%s6 + $0x260] sm:$0xff]
    %v1716 = vld [vmem:[%s6 + $0x268] sm:$0xff]
    %v1717 = vld [vmem:[%s6 + $0x270] sm:$0xff]
    %v1718 = vld [vmem:[%s6 + $0x278] sm:$0xff]
    %v1719 = vld [vmem:[%s6 + $0x280] sm:$0xff]
    %v1720 = vld [vmem:[%s6 + $0x288] sm:$0xff]
    %v1721 = vld [vmem:[%s6 + $0x290] sm:$0xff]
    %v1722 = vld [vmem:[%s6 + $0x298] sm:$0xff]
    %v1723 = vld [vmem:[%s6 + $0x2a0] sm:$0xff]
    %v1724 = vld [vmem:[%s6 + $0x2a8] sm:$0xff]
    %v1725 = vld [vmem:[%s6 + $0x2b0] sm:$0xff]
    %v1726 = vld [vmem:[%s6 + $0x2b8] sm:$0xff]
    %v1727 = vld [vmem:[%s6 + $0x2c0] sm:$0xff]
    %v1728 = vld [vmem:[%s6 + $0x2c8] sm:$0xff]
    %v1729 = vld [vmem:[%s6 + $0x2d0] sm:$0xff]
    %v1730 = vld [vmem:[%s6 + $0x2d8] sm:$0xff]
    %v1731 = vld [vmem:[%s6 + $0x2e0] sm:$0xff]
    %v1732 = vld [vmem:[%s6 + $0x2e8] sm:$0xff]
    %v1733 = vld [vmem:[%s6 + $0x2f0] sm:$0xff]
    %v1734 = vld [vmem:[%s6 + $0x2f8] sm:$0xff]
    %v1735 = vld [vmem:[%s6 + $0x300] sm:$0xff]
    %v1736 = vld [vmem:[%s6 + $0x308] sm:$0xff]
    %v1737 = vld [vmem:[%s6 + $0x310] sm:$0xff]
    %v1738 = vld [vmem:[%s6 + $0x318] sm:$0xff]
    %v1739 = vld [vmem:[%s6 + $0x320] sm:$0xff]
    %v1740 = vld [vmem:[%s6 + $0x328] sm:$0xff]
    %v1741 = vld [vmem:[%s6 + $0x330] sm:$0xff]
    %v1742 = vld [vmem:[%s6 + $0x338] sm:$0xff]
    %v1743 = vld [vmem:[%s6 + $0x340] sm:$0xff]
    %v1744 = vld [vmem:[%s6 + $0x348] sm:$0xff]
    %v1745 = vld [vmem:[%s6 + $0x350] sm:$0xff]
    %v1746 = vld [vmem:[%s6 + $0x358] sm:$0xff]
    %v1747 = vld [vmem:[%s6 + $0x360] sm:$0xff]
    %v1748 = vld [vmem:[%s6 + $0x368] sm:$0xff]
    %v1749 = vld [vmem:[%s6 + $0x370] sm:$0xff]
    %v1750 = vld [vmem:[%s6 + $0x378] sm:$0xff]
    %v1751 = vld [vmem:[%s6 + $0x380] sm:$0xff]
    %v1752 = vld [vmem:[%s6 + $0x388] sm:$0xff]
    %v1753 = vld [vmem:[%s6 + $0x390] sm:$0xff]
    %v1754 = vld [vmem:[%s6 + $0x398] sm:$0xff]
    %v1755 = vld [vmem:[%s6 + $0x3a0] sm:$0xff]
    %v1756 = vld [vmem:[%s6 + $0x3a8] sm:$0xff]
    %v1757 = vld [vmem:[%s6 + $0x3b0] sm:$0xff]
    %v1758 = vld [vmem:[%s6 + $0x3b8] sm:$0xff]
    %v1759 = vld [vmem:[%s6 + $0x3c0] sm:$0xff]
    %v1760 = vld [vmem:[%s6 + $0x3c8] sm:$0xff]
    %v1761 = vld [vmem:[%s6 + $0x3d0] sm:$0xff]
    %v1762 = vld [vmem:[%s6 + $0x3d8] sm:$0xff]
    %v1763 = vld [vmem:[%s6 + $0x3e0] sm:$0xff]
    %v1764 = vld [vmem:[%s6 + $0x3e8] sm:$0xff]
    %v1765 = vld [vmem:[%s6 + $0x3f0] sm:$0xff]
    %v1766 = vld [vmem:[%s6 + $0x3f8] sm:$0xff]
    %v1767 = vld [vmem:[%s7] sm:$0x1]
    %v1769 = vlaneseq
    %v1770 = vshrl.u32 %v1769, 7
    %v1771 = vsub.s32 0, %v1770
    %v1772 = vrot.slane %v1767, %v1771
    %1774 = vmatprep.subr.mxu0 0.0
    %1775 = vmatpush1.msra.mxu0 %v1639
    %1776 = vmatprep.subr.mxu0 0.0
    %1777 = vmatpush1.msra.mxu0 %v1640
    %1778 = vmatprep.subr.mxu0 0.0
    %1779 = vmatpush1.msra.mxu0 %v1641
    %1780 = vmatprep.subr.mxu0 0.0
    %1781 = vmatpush1.msra.mxu0 %v1642
    %1782 = vmatprep.subr.mxu0 0.0
    %1783 = vmatpush1.msra.mxu0 %v1643
    %1784 = vmatprep.subr.mxu0 0.0
    %1785 = vmatpush1.msra.mxu0 %v1644
    %1786 = vmatprep.subr.mxu0 0.0
    %1787 = vmatpush1.msra.mxu0 %v1645
    %1788 = vmatprep.subr.mxu0 0.0
    %1789 = vmatpush1.msra.mxu0 %v1646
    %1790 = vmatprep.subr.mxu0 0.0
    %1791 = vmatpush1.msra.mxu0 %v1647
    %1792 = vmatprep.subr.mxu0 0.0
    %1793 = vmatpush1.msra.mxu0 %v1648
    %1794 = vmatprep.subr.mxu0 0.0
    %1795 = vmatpush1.msra.mxu0 %v1649
    %1796 = vmatprep.subr.mxu0 0.0
    %1797 = vmatpush1.msra.mxu0 %v1650
    %1798 = vmatprep.subr.mxu0 0.0
    %1799 = vmatpush1.msra.mxu0 %v1651
    %1800 = vmatprep.subr.mxu0 0.0
    %1801 = vmatpush1.msra.mxu0 %v1652
    %1802 = vmatprep.subr.mxu0 0.0
    %1803 = vmatpush1.msra.mxu0 %v1653
    %1804 = vmatprep.subr.mxu0 0.0
    %1805 = vmatpush1.msra.mxu0 %v1654
    %1806 = vmatprep.subr.mxu0 0.0
    %1807 = vmatpush1.msra.mxu0 %v1655
    %1808 = vmatprep.subr.mxu0 0.0
    %1809 = vmatpush1.msra.mxu0 %v1656
    %1810 = vmatprep.subr.mxu0 0.0
    %1811 = vmatpush1.msra.mxu0 %v1657
    %1812 = vmatprep.subr.mxu0 0.0
    %1813 = vmatpush1.msra.mxu0 %v1658
    %1814 = vmatprep.subr.mxu0 0.0
    %1815 = vmatpush1.msra.mxu0 %v1659
    %1816 = vmatprep.subr.mxu0 0.0
    %1817 = vmatpush1.msra.mxu0 %v1660
    %1818 = vmatprep.subr.mxu0 0.0
    %1819 = vmatpush1.msra.mxu0 %v1661
    %1820 = vmatprep.subr.mxu0 0.0
    %1821 = vmatpush1.msra.mxu0 %v1662
    %1822 = vmatprep.subr.mxu0 0.0
    %1823 = vmatpush1.msra.mxu0 %v1663
    %1824 = vmatprep.subr.mxu0 0.0
    %1825 = vmatpush1.msra.mxu0 %v1664
    %1826 = vmatprep.subr.mxu0 0.0
    %1827 = vmatpush1.msra.mxu0 %v1665
    %1828 = vmatprep.subr.mxu0 0.0
    %1829 = vmatpush1.msra.mxu0 %v1666
    %1830 = vmatprep.subr.mxu0 0.0
    %1831 = vmatpush1.msra.mxu0 %v1667
    %1832 = vmatprep.subr.mxu0 0.0
    %1833 = vmatpush1.msra.mxu0 %v1668
    %1834 = vmatprep.subr.mxu0 0.0
    %1835 = vmatpush1.msra.mxu0 %v1669
    %1836 = vmatprep.subr.mxu0 0.0
    %1837 = vmatpush1.msra.mxu0 %v1670
    %1838 = vmatprep.mubr.f32.mxu0 %v1424
    %1839 = vmatmul.mubr.f32.gmra.mrb[0].mxu0 %v1422
    %v1840 = vpop.f32.mrb[0].mxu0
    %v1841 = vadd.f32 %v1772, %v1840
    %v1842 = vpop.f32.mrb[0].mxu0
    %1843 = vdwg.mxu0
    %1844 = vmatprep.subr.mxu0 0.0
    %1845 = vmatpush1.msra.mxu0 %v1671
    %1846 = vmatprep.subr.mxu0 0.0
    %1847 = vmatpush1.msra.mxu0 %v1672
    %1848 = vmatprep.subr.mxu0 0.0
    %1849 = vmatpush1.msra.mxu0 %v1673
    %1850 = vmatprep.subr.mxu0 0.0
    %1851 = vmatpush1.msra.mxu0 %v1674
    %1852 = vmatprep.subr.mxu0 0.0
    %1853 = vmatpush1.msra.mxu0 %v1675
    %1854 = vmatprep.subr.mxu0 0.0
    %1855 = vmatpush1.msra.mxu0 %v1676
    %1856 = vmatprep.subr.mxu0 0.0
    %1857 = vmatpush1.msra.mxu0 %v1677
    %1858 = vmatprep.subr.mxu0 0.0
    %1859 = vmatpush1.msra.mxu0 %v1678
    %1860 = vmatprep.subr.mxu0 0.0
    %1861 = vmatpush1.msra.mxu0 %v1679
    %1862 = vmatprep.subr.mxu0 0.0
    %1863 = vmatpush1.msra.mxu0 %v1680
    %1864 = vmatprep.subr.mxu0 0.0
    %1865 = vmatpush1.msra.mxu0 %v1681
    %1866 = vmatprep.subr.mxu0 0.0
    %1867 = vmatpush1.msra.mxu0 %v1682
    %1868 = vmatprep.subr.mxu0 0.0
    %1869 = vmatpush1.msra.mxu0 %v1683
    %1870 = vmatprep.subr.mxu0 0.0
    %1871 = vmatpush1.msra.mxu0 %v1684
    %1872 = vmatprep.subr.mxu0 0.0
    %1873 = vmatpush1.msra.mxu0 %v1685
    %1874 = vmatprep.subr.mxu0 0.0
    %1875 = vmatpush1.msra.mxu0 %v1686
    %1876 = vmatprep.subr.mxu0 0.0
    %1877 = vmatpush1.msra.mxu0 %v1687
    %1878 = vmatprep.subr.mxu0 0.0
    %1879 = vmatpush1.msra.mxu0 %v1688
    %1880 = vmatprep.subr.mxu0 0.0
    %1881 = vmatpush1.msra.mxu0 %v1689
    %1882 = vmatprep.subr.mxu0 0.0
    %1883 = vmatpush1.msra.mxu0 %v1690
    %1884 = vmatprep.subr.mxu0 0.0
    %1885 = vmatpush1.msra.mxu0 %v1691
    %1886 = vmatprep.subr.mxu0 0.0
    %1887 = vmatpush1.msra.mxu0 %v1692
    %1888 = vmatprep.subr.mxu0 0.0
    %1889 = vmatpush1.msra.mxu0 %v1693
    %1890 = vmatprep.subr.mxu0 0.0
    %1891 = vmatpush1.msra.mxu0 %v1694
    %1892 = vmatprep.subr.mxu0 0.0
    %1893 = vmatpush1.msra.mxu0 %v1695
    %1894 = vmatprep.subr.mxu0 0.0
    %1895 = vmatpush1.msra.mxu0 %v1696
    %1896 = vmatprep.subr.mxu0 0.0
    %1897 = vmatpush1.msra.mxu0 %v1697
    %1898 = vmatprep.subr.mxu0 0.0
    %1899 = vmatpush1.msra.mxu0 %v1698
    %1900 = vmatprep.subr.mxu0 0.0
    %1901 = vmatpush1.msra.mxu0 %v1699
    %1902 = vmatprep.subr.mxu0 0.0
    %1903 = vmatpush1.msra.mxu0 %v1700
    %1904 = vmatprep.subr.mxu0 0.0
    %1905 = vmatpush1.msra.mxu0 %v1701
    %1906 = vmatprep.subr.mxu0 0.0
    %1907 = vmatpush1.msra.mxu0 %v1702
    %1908 = vmatprep.mubr.f32.mxu0 %v1495
    %1909 = vmatmul.mubr.f32.gmra.mrb[0].mxu0 %v1493
    %v1910 = vpop.f32.mrb[0].mxu0
    %v1911 = vadd.f32 %v1841, %v1910
    %v1912 = vpop.f32.mrb[0].mxu0
    %1913 = vdwg.mxu0
    %1914 = vmatprep.subr.mxu0 0.0
    %1915 = vmatpush1.msra.mxu0 %v1703
    %1916 = vmatprep.subr.mxu0 0.0
    %1917 = vmatpush1.msra.mxu0 %v1704
    %1918 = vmatprep.subr.mxu0 0.0
    %1919 = vmatpush1.msra.mxu0 %v1705
    %1920 = vmatprep.subr.mxu0 0.0
    %1921 = vmatpush1.msra.mxu0 %v1706
    %1922 = vmatprep.subr.mxu0 0.0
    %1923 = vmatpush1.msra.mxu0 %v1707
    %1924 = vmatprep.subr.mxu0 0.0
    %1925 = vmatpush1.msra.mxu0 %v1708
    %1926 = vmatprep.subr.mxu0 0.0
    %1927 = vmatpush1.msra.mxu0 %v1709
    %1928 = vmatprep.subr.mxu0 0.0
    %1929 = vmatpush1.msra.mxu0 %v1710
    %1930 = vmatprep.subr.mxu0 0.0
    %1931 = vmatpush1.msra.mxu0 %v1711
    %1932 = vmatprep.subr.mxu0 0.0
    %1933 = vmatpush1.msra.mxu0 %v1712
    %1934 = vmatprep.subr.mxu0 0.0
    %1935 = vmatpush1.msra.mxu0 %v1713
    %1936 = vmatprep.subr.mxu0 0.0
    %1937 = vmatpush1.msra.mxu0 %v1714
    %1938 = vmatprep.subr.mxu0 0.0
    %1939 = vmatpush1.msra.mxu0 %v1715
    %1940 = vmatprep.subr.mxu0 0.0
    %1941 = vmatpush1.msra.mxu0 %v1716
    %1942 = vmatprep.subr.mxu0 0.0
    %1943 = vmatpush1.msra.mxu0 %v1717
    %1944 = vmatprep.subr.mxu0 0.0
    %1945 = vmatpush1.msra.mxu0 %v1718
    %1946 = vmatprep.subr.mxu0 0.0
    %1947 = vmatpush1.msra.mxu0 %v1719
    %1948 = vmatprep.subr.mxu0 0.0
    %1949 = vmatpush1.msra.mxu0 %v1720
    %1950 = vmatprep.subr.mxu0 0.0
    %1951 = vmatpush1.msra.mxu0 %v1721
    %1952 = vmatprep.subr.mxu0 0.0
    %1953 = vmatpush1.msra.mxu0 %v1722
    %1954 = vmatprep.subr.mxu0 0.0
    %1955 = vmatpush1.msra.mxu0 %v1723
    %1956 = vmatprep.subr.mxu0 0.0
    %1957 = vmatpush1.msra.mxu0 %v1724
    %1958 = vmatprep.subr.mxu0 0.0
    %1959 = vmatpush1.msra.mxu0 %v1725
    %1960 = vmatprep.subr.mxu0 0.0
    %1961 = vmatpush1.msra.mxu0 %v1726
    %1962 = vmatprep.subr.mxu0 0.0
    %1963 = vmatpush1.msra.mxu0 %v1727
    %1964 = vmatprep.subr.mxu0 0.0
    %1965 = vmatpush1.msra.mxu0 %v1728
    %1966 = vmatprep.subr.mxu0 0.0
    %1967 = vmatpush1.msra.mxu0 %v1729
    %1968 = vmatprep.subr.mxu0 0.0
    %1969 = vmatpush1.msra.mxu0 %v1730
    %1970 = vmatprep.subr.mxu0 0.0
    %1971 = vmatpush1.msra.mxu0 %v1731
    %1972 = vmatprep.subr.mxu0 0.0
    %1973 = vmatpush1.msra.mxu0 %v1732
    %1974 = vmatprep.subr.mxu0 0.0
    %1975 = vmatpush1.msra.mxu0 %v1733
    %1976 = vmatprep.subr.mxu0 0.0
    %1977 = vmatpush1.msra.mxu0 %v1734
    %1978 = vmatprep.mubr.f32.mxu0 %v1566
    %1979 = vmatmul.mubr.f32.gmra.mrb[0].mxu0 %v1564
    %v1980 = vpop.f32.mrb[0].mxu0
    %v1981 = vadd.f32 %v1911, %v1980
    %v1982 = vpop.f32.mrb[0].mxu0
    %1983 = vdwg.mxu0
    %1984 = vmatprep.subr.mxu0 0.0
    %1985 = vmatpush1.msra.mxu0 %v1735
    %1986 = vmatprep.subr.mxu0 0.0
    %1987 = vmatpush1.msra.mxu0 %v1736
    %1988 = vmatprep.subr.mxu0 0.0
    %1989 = vmatpush1.msra.mxu0 %v1737
    %1990 = vmatprep.subr.mxu0 0.0
    %1991 = vmatpush1.msra.mxu0 %v1738
    %1992 = vmatprep.subr.mxu0 0.0
    %1993 = vmatpush1.msra.mxu0 %v1739
    %1994 = vmatprep.subr.mxu0 0.0
    %1995 = vmatpush1.msra.mxu0 %v1740
    %1996 = vmatprep.subr.mxu0 0.0
    %1997 = vmatpush1.msra.mxu0 %v1741
    %1998 = vmatprep.subr.mxu0 0.0
    %1999 = vmatpush1.msra.mxu0 %v1742
    %2000 = vmatprep.subr.mxu0 0.0
    %2001 = vmatpush1.msra.mxu0 %v1743
    %2002 = vmatprep.subr.mxu0 0.0
    %2003 = vmatpush1.msra.mxu0 %v1744
    %2004 = vmatprep.subr.mxu0 0.0
    %2005 = vmatpush1.msra.mxu0 %v1745
    %2006 = vmatprep.subr.mxu0 0.0
    %2007 = vmatpush1.msra.mxu0 %v1746
    %2008 = vmatprep.subr.mxu0 0.0
    %2009 = vmatpush1.msra.mxu0 %v1747
    %2010 = vmatprep.subr.mxu0 0.0
    %2011 = vmatpush1.msra.mxu0 %v1748
    %2012 = vmatprep.subr.mxu0 0.0
    %2013 = vmatpush1.msra.mxu0 %v1749
    %2014 = vmatprep.subr.mxu0 0.0
    %2015 = vmatpush1.msra.mxu0 %v1750
    %2016 = vmatprep.subr.mxu0 0.0
    %2017 = vmatpush1.msra.mxu0 %v1751
    %2018 = vmatprep.subr.mxu0 0.0
    %2019 = vmatpush1.msra.mxu0 %v1752
    %2020 = vmatprep.subr.mxu0 0.0
    %2021 = vmatpush1.msra.mxu0 %v1753
    %2022 = vmatprep.subr.mxu0 0.0
    %2023 = vmatpush1.msra.mxu0 %v1754
    %2024 = vmatprep.subr.mxu0 0.0
    %2025 = vmatpush1.msra.mxu0 %v1755
    %2026 = vmatprep.subr.mxu0 0.0
    %2027 = vmatpush1.msra.mxu0 %v1756
    %2028 = vmatprep.subr.mxu0 0.0
    %2029 = vmatpush1.msra.mxu0 %v1757
    %2030 = vmatprep.subr.mxu0 0.0
    %2031 = vmatpush1.msra.mxu0 %v1758
    %2032 = vmatprep.subr.mxu0 0.0
    %2033 = vmatpush1.msra.mxu0 %v1759
    %2034 = vmatprep.subr.mxu0 0.0
    %2035 = vmatpush1.msra.mxu0 %v1760
    %2036 = vmatprep.subr.mxu0 0.0
    %2037 = vmatpush1.msra.mxu0 %v1761
    %2038 = vmatprep.subr.mxu0 0.0
    %2039 = vmatpush1.msra.mxu0 %v1762
    %2040 = vmatprep.subr.mxu0 0.0
    %2041 = vmatpush1.msra.mxu0 %v1763
    %2042 = vmatprep.subr.mxu0 0.0
    %2043 = vmatpush1.msra.mxu0 %v1764
    %2044 = vmatprep.subr.mxu0 0.0
    %2045 = vmatpush1.msra.mxu0 %v1765
    %2046 = vmatprep.subr.mxu0 0.0
    %2047 = vmatpush1.msra.mxu0 %v1766
    %2048 = vmatprep.mubr.f32.mxu0 %v1637
    %2049 = vmatmul.mubr.f32.gmra.mrb[0].mxu0 %v1635
    %v2050 = vpop.f32.mrb[0].mxu0
    %v2051 = vadd.f32 %v1981, %v2050
    %v2052 = vpop.f32.mrb[0].mxu0
    %2053 = vdwg.mxu0
    %vm2054 = vcmask 7168
    %2055 = vst.msk [vmem:[%s9] sm:$0xff] %vm2054, %v2051
    %vm2056 = vcmask 138248
    %v2057 = vsel %vm2056, %v2051, -inf
    %2058 = vmax.xlane.f32.xlu0 %v2057
    %v2059 = vpop.xlane.xlu0 %2058
    %v2060 = vsub.f32 %v2051, %v2059
    %v2061 = vmul.f32 %v2060, 1.442695
    %v2062 = vpow.pop %v2061
    %2064 = vrot.lane.b32.xlu0 %v2062, 127
    %v2065 = vpop.permute.xlu0 %2064
    %vm2067 = vcmask 130048
    %v2068 = vsel %vm2067, %v2065, 0.0
    %2069 = vadd.xlane.f32.xlu0 %v2068
    %v2070 = vpop.xlane.xlu0 %2069
    %v2071 = vlog2.pop %v2070
    %v2072 = vmul.f32 %v2071, 0.6931472
    %v2073 = vadd.f32 %v2059, %v2072
    %v2074 = vld [vmem:[%s8] sm:$0xff]
    %2076 = vrot.lane.b32.xlu0 %v2074, 1
    %v2077 = vpop.permute.xlu0 %2076
    %v2079 = vmul.f32 %v2051, %v2077
    %2081 = vrot.lane.b32.xlu0 %v2079, 127
    %v2082 = vpop.permute.xlu0 %2081
    %v2084 = vsel %vm2067, %v2082, 0.0
    %2085 = vadd.xlane.f32.xlu0 %v2084
    %v2086 = vpop.xlane.xlu0 %2085
    %v2087 = vsub.f32 %v2073, %v2086
    %v2088 = vrot.slane %v2087, 4
    %v2089 = vadd.f32 %v2087, %v2088
    %v2090 = vrot.slane %v2089, 2
    %v2091 = vadd.f32 %v2089, %v2090
    %v2092 = vrot.slane %v2091, 1
    %v2093 = vadd.f32 %v2091, %v2092
    %v2094 = vmul.f32 %v2093, 0.125
    %vm2095 = vcmask 0
    %2096 = vst.msk [vmem:[#allocation3] sm:$0x1] %vm2095, %v2094
    // Predicated region
    $region38: #{ac_crop_discriminator_forward.1} parent=1 // pred_check
      _
    $region39: #{ac_crop_discriminator_forward.1} parent=1 // pred_check_branch
      %2098 = sbr.rel (0) target = $region41
    $region40: #{ac_crop_discriminator_forward.1} parent=1 // pred_region
      _
    $region41: #{ac_crop_discriminator_forward.1} parent=1 // pred_fallthru
      _
    // Predicated region
    $region42: #{ac_crop_discriminator_forward.1} parent=1 // pred_check
      _
    $region43: #{ac_crop_discriminator_forward.1} parent=1 // pred_check_branch
      %2100 = sbr.rel (0) target = $region45
    $region44: #{ac_crop_discriminator_forward.1} parent=1 // pred_region
      %s2102 = ssub.s32 16, 16
      %2103 = vsyncadd [#allocation4], %s2102
      %s2105 = sshll.u32 [#allocation3], 4
      %s2106 = int_to_ptr.vmem [resolvable:$true] %s2105
      %2108 = dma.vmem_to_hbm [thread:$0]  %s2106, 16, %s10, [#allocation4]
    $region45: #{ac_crop_discriminator_forward.1} parent=1 // pred_fallthru
      _
    // Predicated region
    $region46: #{ac_crop_discriminator_forward.1} parent=1 // pred_check
      _
    $region47: #{ac_crop_discriminator_forward.1} parent=1 // pred_check_branch
      %2110 = sbr.rel (0) target = $region49
    $region48: #{ac_crop_discriminator_forward.1} parent=1 // pred_region
      _
    $region49: #{ac_crop_discriminator_forward.1} parent=1 // pred_fallthru
      _
    // Predicated region
    $region50: #{ac_crop_discriminator_forward.1} parent=1 // pred_check
      _
    $region51: #{ac_crop_discriminator_forward.1} parent=1 // pred_check_branch
      %2112 = sbr.rel (0) target = $region53
    $region52: #{ac_crop_discriminator_forward.1} parent=1 // pred_region
      %2113 = dma.done [#allocation4], 16
    $region53: #{ac_crop_discriminator_forward.1} parent=1 // pred_fallthru
      _
    %2114 = vsyncpa [#allocation4], 1

</llo_original>
